<compile_context>
chip_gen: v7x
topology: tpu7x:2x2x1
jax: 0.10.0
libtpu: 0.0.40
codegen_flags: <defaults>
</compile_context>

<pallas_src>
import jax
import jax.numpy as jnp
from jax import lax
from jax.experimental import pallas as pl
from jax.experimental.pallas import tpu as pltpu


def _make_kernel(S, Bp, F, H, O):
    def kernel(x_ref, h0_ref, c0_ref,
               w1_ref, b1_ref,
               wih_ref, whh_ref, bl_ref,
               w2_ref, b2_ref, w3_ref, b3_ref,
               out_ref, hn_ref, cn_ref):
        # ---- one-shot precompute of everything not on the recurrence ----
        # x_ref: (S*Bp, F), time-major rows (timestep-major, batch-minor).
        h1 = jnp.maximum(
            jnp.dot(x_ref[...], w1_ref[...],
                    preferred_element_type=jnp.float32) + b1_ref[...],
            0.0)                                                 # (S*Bp, H)
        gates_x = (jnp.dot(h1, wih_ref[...],
                           preferred_element_type=jnp.float32)
                   + bl_ref[...])                                # (S*Bp, 4H)

        # Hoist weight / state loads out of the loop; carry h, c in vregs.
        whh = whh_ref[...]                                       # (H, 4H)
        h = h0_ref[...]                                          # (Bp, H)
        c = c0_ref[...]                                          # (Bp, H)

        # ---- serial recurrence: only h @ W_hh + gates on the chain ----
        # S is a compile-time constant; fully unrolled straight-line code.
        for t in range(S):
            gates = gates_x[t * Bp:(t + 1) * Bp, :] + jnp.dot(
                h, whh, preferred_element_type=jnp.float32)      # (Bp, 4H)
            # One full-width (128-lane) sigmoid vreg pass for i/f/o, and a
            # narrow tanh only on the g column (saves a 2nd full-width EUP
            # pass per step on the serial chain).
            sig = jax.nn.sigmoid(gates)
            i_g = sig[:, 0 * H:1 * H]
            f_g = sig[:, 1 * H:2 * H]
            o_g = sig[:, 3 * H:4 * H]
            g_g = jnp.tanh(gates[:, 2 * H:3 * H])
            c = f_g * c + i_g * g_g
            h = o_g * jnp.tanh(c)

        # ---- head on the last timestep only ----
        h2 = jnp.maximum(
            jnp.dot(h, w2_ref[...],
                    preferred_element_type=jnp.float32) + b2_ref[...],
            0.0)                                                 # (Bp, H)
        out_ref[...] = (jnp.dot(h2, w3_ref[...],
                                preferred_element_type=jnp.float32)
                        + b3_ref[...])                           # (Bp, O)
        hn_ref[...] = h
        cn_ref[...] = c

    return kernel


def recurrent_latent_encoder_fwd(x, hidden_in, params):
    """x: (B, S, F) batch-first (PyTorch convention). hidden_in: ((1,B,H),(1,B,H))."""
    B, S, F = x.shape
    H = params["w2"].shape[0]
    O = params["w3"].shape[1]

    # Pad batch (sublane dim) to a multiple of 8 so MXU/VPU tiles and output
    # stores are sublane-dense. Padded rows are zeros and discarded afterwards.
    Bp = ((B + 7) // 8) * 8

    x_tm = jnp.transpose(x, (1, 0, 2)).astype(jnp.float32)       # (S, B, F) time-major
    x_tm = jnp.pad(x_tm, ((0, 0), (0, Bp - B), (0, 0)))          # (S, Bp, F)
    x_flat = x_tm.reshape(S * Bp, F)                             # (S*Bp, F)

    h0 = jnp.pad(hidden_in[0].reshape(B, H).astype(jnp.float32),
                 ((0, Bp - B), (0, 0)))
    c0 = jnp.pad(hidden_in[1].reshape(B, H).astype(jnp.float32),
                 ((0, Bp - B), (0, 0)))

    kernel = _make_kernel(S, Bp, F, H, O)
    vmem = lambda: pl.BlockSpec(memory_space=pltpu.MemorySpace.VMEM)

    out, h_n, c_n = pl.pallas_call(
        kernel,
        out_shape=(jax.ShapeDtypeStruct((Bp, O), jnp.float32),
                   jax.ShapeDtypeStruct((Bp, H), jnp.float32),
                   jax.ShapeDtypeStruct((Bp, H), jnp.float32)),
        in_specs=[vmem() for _ in range(12)],
        out_specs=(vmem(), vmem(), vmem()),
    )(x_flat, h0, c0,
      params["w1"], params["b1"],
      params["w_ih"], params["w_hh"], params["b_lstm"],
      params["w2"], params["b2"], params["w3"], params["b3"])

    out = out[:B]
    h_n = h_n[:B].reshape(1, B, H)
    c_n = c_n[:B].reshape(1, B, H)
    return out, (h_n, c_n)


def init_params(key, input_dim, latent_dim, hidden_dim):
    """Deterministic synthetic parameters. Weights stored (in, out)-transposed."""
    H, F, O = hidden_dim, input_dim, 2 * latent_dim
    ks = jax.random.split(key, 10)
    s = 0.1
    w1 = s * jax.random.normal(ks[0], (F, H), jnp.float32)
    b1 = s * jax.random.normal(ks[1], (1, H), jnp.float32)
    w_ih = s * jax.random.normal(ks[2], (H, 4 * H), jnp.float32)
    w_hh = s * jax.random.normal(ks[3], (H, 4 * H), jnp.float32)
    b_ih = s * jax.random.normal(ks[4], (1, 4 * H), jnp.float32)
    b_hh = s * jax.random.normal(ks[5], (1, 4 * H), jnp.float32)
    w2 = s * jax.random.normal(ks[6], (H, H), jnp.float32)
    b2 = s * jax.random.normal(ks[7], (1, H), jnp.float32)
    w3 = s * jax.random.normal(ks[8], (H, O), jnp.float32)
    b3 = s * jax.random.normal(ks[9], (1, O), jnp.float32)
    return dict(w1=w1, b1=b1, w_ih=w_ih, w_hh=w_hh, b_lstm=b_ih + b_hh,
                w2=w2, b2=b2, w3=w3, b3=b3)


def reference_fwd(x, hidden_in, p):
    """Pure-JAX reference matching the PyTorch forward."""
    B, S, F = x.shape
    H = p["w2"].shape[0]
    h1 = jax.nn.relu(jnp.einsum("bsf,fh->bsh", x, p["w1"]) + p["b1"])

    def step(carry, xt):                       # xt: (B, H)
        h, c = carry
        gates = xt @ p["w_ih"] + h @ p["w_hh"] + p["b_lstm"]
        i = jax.nn.sigmoid(gates[:, 0 * H:1 * H])
        f = jax.nn.sigmoid(gates[:, 1 * H:2 * H])
        g = jnp.tanh(gates[:, 2 * H:3 * H])
        o = jax.nn.sigmoid(gates[:, 3 * H:4 * H])
        c = f * c + i * g
        h = o * jnp.tanh(c)
        return (h, c), h

    h0 = hidden_in[0].reshape(B, H)
    c0 = hidden_in[1].reshape(B, H)
    (h_n, c_n), _ = lax.scan(step, (h0, c0), jnp.transpose(h1, (1, 0, 2)))
    out = jax.nn.relu(h_n @ p["w2"] + p["b2"]) @ p["w3"] + p["b3"]
    return out, (h_n.reshape(1, B, H), c_n.reshape(1, B, H))


if __name__ == "__main__":
    # small shapes consistent with the module's forward
    B, S = 2, 8
    input_dim, latent_dim, hidden_dim = 8, 8, 32

    key = jax.random.PRNGKey(0)
    k_x, k_p = jax.random.split(key)
    x = jax.random.normal(k_x, (B, S, input_dim), jnp.float32)
    hidden_in = (jnp.zeros((1, B, hidden_dim), jnp.float32),
                 jnp.zeros((1, B, hidden_dim), jnp.float32))
    params = init_params(k_p, input_dim, latent_dim, hidden_dim)

    fwd = jax.jit(recurrent_latent_encoder_fwd)
    out, (h_n, c_n) = fwd(x, hidden_in, params)
    jax.block_until_ready((out, h_n, c_n))

    out_ref, (h_ref, c_ref) = reference_fwd(x, hidden_in, params)
    assert out.shape == (B, 2 * latent_dim)
    assert h_n.shape == (1, B, hidden_dim) and c_n.shape == (1, B, hidden_dim)
    assert jnp.allclose(out, out_ref, atol=1e-4), "output mismatch"
    assert jnp.allclose(h_n, h_ref, atol=1e-4), "h_n mismatch"
    assert jnp.allclose(c_n, c_ref, atol=1e-4), "c_n mismatch"

    print("KERNEL_OK")
</pallas_src>

<mosaic_0001>
module attributes {stable_mosaic.version = 11 : i64} {
  func.func @kernel(%arg0: memref<64x8xf32, #tpu.memory_space<vmem>>, %arg1: memref<8x32xf32, #tpu.memory_space<vmem>>, %arg2: memref<8x32xf32, #tpu.memory_space<vmem>>, %arg3: memref<8x32xf32, #tpu.memory_space<vmem>>, %arg4: memref<1x32xf32, #tpu.memory_space<vmem>>, %arg5: memref<32x128xf32, #tpu.memory_space<vmem>>, %arg6: memref<32x128xf32, #tpu.memory_space<vmem>>, %arg7: memref<1x128xf32, #tpu.memory_space<vmem>>, %arg8: memref<32x32xf32, #tpu.memory_space<vmem>>, %arg9: memref<1x32xf32, #tpu.memory_space<vmem>>, %arg10: memref<32x16xf32, #tpu.memory_space<vmem>>, %arg11: memref<1x16xf32, #tpu.memory_space<vmem>>, %arg12: memref<8x16xf32, #tpu.memory_space<vmem>>, %arg13: memref<8x32xf32, #tpu.memory_space<vmem>>, %arg14: memref<8x32xf32, #tpu.memory_space<vmem>>) attributes {dimension_semantics = [], scalar_prefetch = 0 : i64, scratch_operands = 0 : i64, tpu.core_type = #tpu.core_type<tc>} {
    %c0 = arith.constant 0 : index
    %c0_0 = arith.constant 0 : index
    %0 = vector.load %arg0[%c0, %c0_0] : memref<64x8xf32, #tpu.memory_space<vmem>>, vector<64x8xf32>
    %c0_1 = arith.constant 0 : index
    %c0_2 = arith.constant 0 : index
    %1 = vector.load %arg3[%c0_1, %c0_2] : memref<8x32xf32, #tpu.memory_space<vmem>>, vector<8x32xf32>
    %cst = arith.constant dense<0.000000e+00> : vector<64x32xf32>
    %2 = tpu.matmul %0, %1, %cst {dimension_numbers = #tpu.dot_dimension_numbers<[1], [0], [0], [1], [0, 0, 1, 1], [], []>} : vector<64x8xf32>, vector<8x32xf32>, vector<64x32xf32> -> vector<64x32xf32>
    %c0_3 = arith.constant 0 : index
    %c0_4 = arith.constant 0 : index
    %3 = vector.load %arg4[%c0_3, %c0_4] : memref<1x32xf32, #tpu.memory_space<vmem>>, vector<1x32xf32>
    %4 = vector.broadcast %3 : vector<1x32xf32> to vector<64x32xf32>
    %5 = arith.addf %2, %4 : vector<64x32xf32>
    %cst_5 = arith.constant 0.000000e+00 : f32
    %6 = vector.broadcast %cst_5 : f32 to vector<64x32xf32>
    %7 = arith.maximumf %5, %6 : vector<64x32xf32>
    %c0_6 = arith.constant 0 : index
    %c0_7 = arith.constant 0 : index
    %8 = vector.load %arg5[%c0_6, %c0_7] : memref<32x128xf32, #tpu.memory_space<vmem>>, vector<32x128xf32>
    %cst_8 = arith.constant dense<0.000000e+00> : vector<64x128xf32>
    %9 = tpu.matmul %7, %8, %cst_8 {dimension_numbers = #tpu.dot_dimension_numbers<[1], [0], [0], [1], [0, 0, 1, 1], [], []>} : vector<64x32xf32>, vector<32x128xf32>, vector<64x128xf32> -> vector<64x128xf32>
    %c0_9 = arith.constant 0 : index
    %c0_10 = arith.constant 0 : index
    %10 = vector.load %arg7[%c0_9, %c0_10] : memref<1x128xf32, #tpu.memory_space<vmem>>, vector<1x128xf32>
    %11 = vector.broadcast %10 : vector<1x128xf32> to vector<64x128xf32>
    %12 = arith.addf %9, %11 : vector<64x128xf32>
    %c0_11 = arith.constant 0 : index
    %c0_12 = arith.constant 0 : index
    %13 = vector.load %arg6[%c0_11, %c0_12] : memref<32x128xf32, #tpu.memory_space<vmem>>, vector<32x128xf32>
    %c0_13 = arith.constant 0 : index
    %c0_14 = arith.constant 0 : index
    %14 = vector.load %arg1[%c0_13, %c0_14] : memref<8x32xf32, #tpu.memory_space<vmem>>, vector<8x32xf32>
    %c0_15 = arith.constant 0 : index
    %c0_16 = arith.constant 0 : index
    %15 = vector.load %arg2[%c0_15, %c0_16] : memref<8x32xf32, #tpu.memory_space<vmem>>, vector<8x32xf32>
    %16 = vector.extract_strided_slice %12 {offsets = [0, 0], sizes = [8, 128], strides = [1, 1]} : vector<64x128xf32> to vector<8x128xf32>
    %cst_17 = arith.constant dense<0.000000e+00> : vector<8x128xf32>
    %17 = tpu.matmul %14, %13, %cst_17 {dimension_numbers = #tpu.dot_dimension_numbers<[1], [0], [0], [1], [0, 0, 1, 1], [], []>} : vector<8x32xf32>, vector<32x128xf32>, vector<8x128xf32> -> vector<8x128xf32>
    %18 = arith.addf %16, %17 : vector<8x128xf32>
    %19 = arith.negf %18 : vector<8x128xf32>
    %20 = math.exp %19 : vector<8x128xf32>
    %cst_18 = arith.constant 1.000000e+00 : f32
    %21 = vector.broadcast %cst_18 : f32 to vector<8x128xf32>
    %22 = arith.addf %21, %20 : vector<8x128xf32>
    %23 = arith.divf %21, %22 : vector<8x128xf32>
    %24 = vector.extract_strided_slice %23 {offsets = [0, 0], sizes = [8, 32], strides = [1, 1]} : vector<8x128xf32> to vector<8x32xf32>
    %25 = vector.extract_strided_slice %23 {offsets = [0, 32], sizes = [8, 32], strides = [1, 1]} : vector<8x128xf32> to vector<8x32xf32>
    %26 = vector.extract_strided_slice %23 {offsets = [0, 96], sizes = [8, 32], strides = [1, 1]} : vector<8x128xf32> to vector<8x32xf32>
    %27 = vector.extract_strided_slice %18 {offsets = [0, 64], sizes = [8, 32], strides = [1, 1]} : vector<8x128xf32> to vector<8x32xf32>
    %28 = math.tanh %27 : vector<8x32xf32>
    %29 = arith.mulf %25, %15 : vector<8x32xf32>
    %30 = arith.mulf %24, %28 : vector<8x32xf32>
    %31 = arith.addf %29, %30 : vector<8x32xf32>
    %32 = math.tanh %31 : vector<8x32xf32>
    %33 = arith.mulf %26, %32 : vector<8x32xf32>
    %34 = vector.extract_strided_slice %12 {offsets = [8, 0], sizes = [8, 128], strides = [1, 1]} : vector<64x128xf32> to vector<8x128xf32>
    %cst_19 = arith.constant dense<0.000000e+00> : vector<8x128xf32>
    %35 = tpu.matmul %33, %13, %cst_19 {dimension_numbers = #tpu.dot_dimension_numbers<[1], [0], [0], [1], [0, 0, 1, 1], [], []>} : vector<8x32xf32>, vector<32x128xf32>, vector<8x128xf32> -> vector<8x128xf32>
    %36 = arith.addf %34, %35 : vector<8x128xf32>
    %37 = arith.negf %36 : vector<8x128xf32>
    %38 = math.exp %37 : vector<8x128xf32>
    %cst_20 = arith.constant 1.000000e+00 : f32
    %39 = vector.broadcast %cst_20 : f32 to vector<8x128xf32>
    %40 = arith.addf %39, %38 : vector<8x128xf32>
    %41 = arith.divf %39, %40 : vector<8x128xf32>
    %42 = vector.extract_strided_slice %41 {offsets = [0, 0], sizes = [8, 32], strides = [1, 1]} : vector<8x128xf32> to vector<8x32xf32>
    %43 = vector.extract_strided_slice %41 {offsets = [0, 32], sizes = [8, 32], strides = [1, 1]} : vector<8x128xf32> to vector<8x32xf32>
    %44 = vector.extract_strided_slice %41 {offsets = [0, 96], sizes = [8, 32], strides = [1, 1]} : vector<8x128xf32> to vector<8x32xf32>
    %45 = vector.extract_strided_slice %36 {offsets = [0, 64], sizes = [8, 32], strides = [1, 1]} : vector<8x128xf32> to vector<8x32xf32>
    %46 = math.tanh %45 : vector<8x32xf32>
    %47 = arith.mulf %43, %31 : vector<8x32xf32>
    %48 = arith.mulf %42, %46 : vector<8x32xf32>
    %49 = arith.addf %47, %48 : vector<8x32xf32>
    %50 = math.tanh %49 : vector<8x32xf32>
    %51 = arith.mulf %44, %50 : vector<8x32xf32>
    %52 = vector.extract_strided_slice %12 {offsets = [16, 0], sizes = [8, 128], strides = [1, 1]} : vector<64x128xf32> to vector<8x128xf32>
    %cst_21 = arith.constant dense<0.000000e+00> : vector<8x128xf32>
    %53 = tpu.matmul %51, %13, %cst_21 {dimension_numbers = #tpu.dot_dimension_numbers<[1], [0], [0], [1], [0, 0, 1, 1], [], []>} : vector<8x32xf32>, vector<32x128xf32>, vector<8x128xf32> -> vector<8x128xf32>
    %54 = arith.addf %52, %53 : vector<8x128xf32>
    %55 = arith.negf %54 : vector<8x128xf32>
    %56 = math.exp %55 : vector<8x128xf32>
    %cst_22 = arith.constant 1.000000e+00 : f32
    %57 = vector.broadcast %cst_22 : f32 to vector<8x128xf32>
    %58 = arith.addf %57, %56 : vector<8x128xf32>
    %59 = arith.divf %57, %58 : vector<8x128xf32>
    %60 = vector.extract_strided_slice %59 {offsets = [0, 0], sizes = [8, 32], strides = [1, 1]} : vector<8x128xf32> to vector<8x32xf32>
    %61 = vector.extract_strided_slice %59 {offsets = [0, 32], sizes = [8, 32], strides = [1, 1]} : vector<8x128xf32> to vector<8x32xf32>
    %62 = vector.extract_strided_slice %59 {offsets = [0, 96], sizes = [8, 32], strides = [1, 1]} : vector<8x128xf32> to vector<8x32xf32>
    %63 = vector.extract_strided_slice %54 {offsets = [0, 64], sizes = [8, 32], strides = [1, 1]} : vector<8x128xf32> to vector<8x32xf32>
    %64 = math.tanh %63 : vector<8x32xf32>
    %65 = arith.mulf %61, %49 : vector<8x32xf32>
    %66 = arith.mulf %60, %64 : vector<8x32xf32>
    %67 = arith.addf %65, %66 : vector<8x32xf32>
    %68 = math.tanh %67 : vector<8x32xf32>
    %69 = arith.mulf %62, %68 : vector<8x32xf32>
    %70 = vector.extract_strided_slice %12 {offsets = [24, 0], sizes = [8, 128], strides = [1, 1]} : vector<64x128xf32> to vector<8x128xf32>
    %cst_23 = arith.constant dense<0.000000e+00> : vector<8x128xf32>
    %71 = tpu.matmul %69, %13, %cst_23 {dimension_numbers = #tpu.dot_dimension_numbers<[1], [0], [0], [1], [0, 0, 1, 1], [], []>} : vector<8x32xf32>, vector<32x128xf32>, vector<8x128xf32> -> vector<8x128xf32>
    %72 = arith.addf %70, %71 : vector<8x128xf32>
    %73 = arith.negf %72 : vector<8x128xf32>
    %74 = math.exp %73 : vector<8x128xf32>
    %cst_24 = arith.constant 1.000000e+00 : f32
    %75 = vector.broadcast %cst_24 : f32 to vector<8x128xf32>
    %76 = arith.addf %75, %74 : vector<8x128xf32>
    %77 = arith.divf %75, %76 : vector<8x128xf32>
    %78 = vector.extract_strided_slice %77 {offsets = [0, 0], sizes = [8, 32], strides = [1, 1]} : vector<8x128xf32> to vector<8x32xf32>
    %79 = vector.extract_strided_slice %77 {offsets = [0, 32], sizes = [8, 32], strides = [1, 1]} : vector<8x128xf32> to vector<8x32xf32>
    %80 = vector.extract_strided_slice %77 {offsets = [0, 96], sizes = [8, 32], strides = [1, 1]} : vector<8x128xf32> to vector<8x32xf32>
    %81 = vector.extract_strided_slice %72 {offsets = [0, 64], sizes = [8, 32], strides = [1, 1]} : vector<8x128xf32> to vector<8x32xf32>
    %82 = math.tanh %81 : vector<8x32xf32>
    %83 = arith.mulf %79, %67 : vector<8x32xf32>
    %84 = arith.mulf %78, %82 : vector<8x32xf32>
    %85 = arith.addf %83, %84 : vector<8x32xf32>
    %86 = math.tanh %85 : vector<8x32xf32>
    %87 = arith.mulf %80, %86 : vector<8x32xf32>
    %88 = vector.extract_strided_slice %12 {offsets = [32, 0], sizes = [8, 128], strides = [1, 1]} : vector<64x128xf32> to vector<8x128xf32>
    %cst_25 = arith.constant dense<0.000000e+00> : vector<8x128xf32>
    %89 = tpu.matmul %87, %13, %cst_25 {dimension_numbers = #tpu.dot_dimension_numbers<[1], [0], [0], [1], [0, 0, 1, 1], [], []>} : vector<8x32xf32>, vector<32x128xf32>, vector<8x128xf32> -> vector<8x128xf32>
    %90 = arith.addf %88, %89 : vector<8x128xf32>
    %91 = arith.negf %90 : vector<8x128xf32>
    %92 = math.exp %91 : vector<8x128xf32>
    %cst_26 = arith.constant 1.000000e+00 : f32
    %93 = vector.broadcast %cst_26 : f32 to vector<8x128xf32>
    %94 = arith.addf %93, %92 : vector<8x128xf32>
    %95 = arith.divf %93, %94 : vector<8x128xf32>
    %96 = vector.extract_strided_slice %95 {offsets = [0, 0], sizes = [8, 32], strides = [1, 1]} : vector<8x128xf32> to vector<8x32xf32>
    %97 = vector.extract_strided_slice %95 {offsets = [0, 32], sizes = [8, 32], strides = [1, 1]} : vector<8x128xf32> to vector<8x32xf32>
    %98 = vector.extract_strided_slice %95 {offsets = [0, 96], sizes = [8, 32], strides = [1, 1]} : vector<8x128xf32> to vector<8x32xf32>
    %99 = vector.extract_strided_slice %90 {offsets = [0, 64], sizes = [8, 32], strides = [1, 1]} : vector<8x128xf32> to vector<8x32xf32>
    %100 = math.tanh %99 : vector<8x32xf32>
    %101 = arith.mulf %97, %85 : vector<8x32xf32>
    %102 = arith.mulf %96, %100 : vector<8x32xf32>
    %103 = arith.addf %101, %102 : vector<8x32xf32>
    %104 = math.tanh %103 : vector<8x32xf32>
    %105 = arith.mulf %98, %104 : vector<8x32xf32>
    %106 = vector.extract_strided_slice %12 {offsets = [40, 0], sizes = [8, 128], strides = [1, 1]} : vector<64x128xf32> to vector<8x128xf32>
    %cst_27 = arith.constant dense<0.000000e+00> : vector<8x128xf32>
    %107 = tpu.matmul %105, %13, %cst_27 {dimension_numbers = #tpu.dot_dimension_numbers<[1], [0], [0], [1], [0, 0, 1, 1], [], []>} : vector<8x32xf32>, vector<32x128xf32>, vector<8x128xf32> -> vector<8x128xf32>
    %108 = arith.addf %106, %107 : vector<8x128xf32>
    %109 = arith.negf %108 : vector<8x128xf32>
    %110 = math.exp %109 : vector<8x128xf32>
    %cst_28 = arith.constant 1.000000e+00 : f32
    %111 = vector.broadcast %cst_28 : f32 to vector<8x128xf32>
    %112 = arith.addf %111, %110 : vector<8x128xf32>
    %113 = arith.divf %111, %112 : vector<8x128xf32>
    %114 = vector.extract_strided_slice %113 {offsets = [0, 0], sizes = [8, 32], strides = [1, 1]} : vector<8x128xf32> to vector<8x32xf32>
    %115 = vector.extract_strided_slice %113 {offsets = [0, 32], sizes = [8, 32], strides = [1, 1]} : vector<8x128xf32> to vector<8x32xf32>
    %116 = vector.extract_strided_slice %113 {offsets = [0, 96], sizes = [8, 32], strides = [1, 1]} : vector<8x128xf32> to vector<8x32xf32>
    %117 = vector.extract_strided_slice %108 {offsets = [0, 64], sizes = [8, 32], strides = [1, 1]} : vector<8x128xf32> to vector<8x32xf32>
    %118 = math.tanh %117 : vector<8x32xf32>
    %119 = arith.mulf %115, %103 : vector<8x32xf32>
    %120 = arith.mulf %114, %118 : vector<8x32xf32>
    %121 = arith.addf %119, %120 : vector<8x32xf32>
    %122 = math.tanh %121 : vector<8x32xf32>
    %123 = arith.mulf %116, %122 : vector<8x32xf32>
    %124 = vector.extract_strided_slice %12 {offsets = [48, 0], sizes = [8, 128], strides = [1, 1]} : vector<64x128xf32> to vector<8x128xf32>
    %cst_29 = arith.constant dense<0.000000e+00> : vector<8x128xf32>
    %125 = tpu.matmul %123, %13, %cst_29 {dimension_numbers = #tpu.dot_dimension_numbers<[1], [0], [0], [1], [0, 0, 1, 1], [], []>} : vector<8x32xf32>, vector<32x128xf32>, vector<8x128xf32> -> vector<8x128xf32>
    %126 = arith.addf %124, %125 : vector<8x128xf32>
    %127 = arith.negf %126 : vector<8x128xf32>
    %128 = math.exp %127 : vector<8x128xf32>
    %cst_30 = arith.constant 1.000000e+00 : f32
    %129 = vector.broadcast %cst_30 : f32 to vector<8x128xf32>
    %130 = arith.addf %129, %128 : vector<8x128xf32>
    %131 = arith.divf %129, %130 : vector<8x128xf32>
    %132 = vector.extract_strided_slice %131 {offsets = [0, 0], sizes = [8, 32], strides = [1, 1]} : vector<8x128xf32> to vector<8x32xf32>
    %133 = vector.extract_strided_slice %131 {offsets = [0, 32], sizes = [8, 32], strides = [1, 1]} : vector<8x128xf32> to vector<8x32xf32>
    %134 = vector.extract_strided_slice %131 {offsets = [0, 96], sizes = [8, 32], strides = [1, 1]} : vector<8x128xf32> to vector<8x32xf32>
    %135 = vector.extract_strided_slice %126 {offsets = [0, 64], sizes = [8, 32], strides = [1, 1]} : vector<8x128xf32> to vector<8x32xf32>
    %136 = math.tanh %135 : vector<8x32xf32>
    %137 = arith.mulf %133, %121 : vector<8x32xf32>
    %138 = arith.mulf %132, %136 : vector<8x32xf32>
    %139 = arith.addf %137, %138 : vector<8x32xf32>
    %140 = math.tanh %139 : vector<8x32xf32>
    %141 = arith.mulf %134, %140 : vector<8x32xf32>
    %142 = vector.extract_strided_slice %12 {offsets = [56, 0], sizes = [8, 128], strides = [1, 1]} : vector<64x128xf32> to vector<8x128xf32>
    %cst_31 = arith.constant dense<0.000000e+00> : vector<8x128xf32>
    %143 = tpu.matmul %141, %13, %cst_31 {dimension_numbers = #tpu.dot_dimension_numbers<[1], [0], [0], [1], [0, 0, 1, 1], [], []>} : vector<8x32xf32>, vector<32x128xf32>, vector<8x128xf32> -> vector<8x128xf32>
    %144 = arith.addf %142, %143 : vector<8x128xf32>
    %145 = arith.negf %144 : vector<8x128xf32>
    %146 = math.exp %145 : vector<8x128xf32>
    %cst_32 = arith.constant 1.000000e+00 : f32
    %147 = vector.broadcast %cst_32 : f32 to vector<8x128xf32>
    %148 = arith.addf %147, %146 : vector<8x128xf32>
    %149 = arith.divf %147, %148 : vector<8x128xf32>
    %150 = vector.extract_strided_slice %149 {offsets = [0, 0], sizes = [8, 32], strides = [1, 1]} : vector<8x128xf32> to vector<8x32xf32>
    %151 = vector.extract_strided_slice %149 {offsets = [0, 32], sizes = [8, 32], strides = [1, 1]} : vector<8x128xf32> to vector<8x32xf32>
    %152 = vector.extract_strided_slice %149 {offsets = [0, 96], sizes = [8, 32], strides = [1, 1]} : vector<8x128xf32> to vector<8x32xf32>
    %153 = vector.extract_strided_slice %144 {offsets = [0, 64], sizes = [8, 32], strides = [1, 1]} : vector<8x128xf32> to vector<8x32xf32>
    %154 = math.tanh %153 : vector<8x32xf32>
    %155 = arith.mulf %151, %139 : vector<8x32xf32>
    %156 = arith.mulf %150, %154 : vector<8x32xf32>
    %157 = arith.addf %155, %156 : vector<8x32xf32>
    %158 = math.tanh %157 : vector<8x32xf32>
    %159 = arith.mulf %152, %158 : vector<8x32xf32>
    %c0_33 = arith.constant 0 : index
    %c0_34 = arith.constant 0 : index
    %160 = vector.load %arg8[%c0_33, %c0_34] : memref<32x32xf32, #tpu.memory_space<vmem>>, vector<32x32xf32>
    %cst_35 = arith.constant dense<0.000000e+00> : vector<8x32xf32>
    %161 = tpu.matmul %159, %160, %cst_35 {dimension_numbers = #tpu.dot_dimension_numbers<[1], [0], [0], [1], [0, 0, 1, 1], [], []>} : vector<8x32xf32>, vector<32x32xf32>, vector<8x32xf32> -> vector<8x32xf32>
    %c0_36 = arith.constant 0 : index
    %c0_37 = arith.constant 0 : index
    %162 = vector.load %arg9[%c0_36, %c0_37] : memref<1x32xf32, #tpu.memory_space<vmem>>, vector<1x32xf32>
    %163 = vector.broadcast %162 : vector<1x32xf32> to vector<8x32xf32>
    %164 = arith.addf %161, %163 : vector<8x32xf32>
    %cst_38 = arith.constant 0.000000e+00 : f32
    %165 = vector.broadcast %cst_38 : f32 to vector<8x32xf32>
    %166 = arith.maximumf %164, %165 : vector<8x32xf32>
    %c0_39 = arith.constant 0 : index
    %c0_40 = arith.constant 0 : index
    %167 = vector.load %arg10[%c0_39, %c0_40] : memref<32x16xf32, #tpu.memory_space<vmem>>, vector<32x16xf32>
    %cst_41 = arith.constant dense<0.000000e+00> : vector<8x16xf32>
    %168 = tpu.matmul %166, %167, %cst_41 {dimension_numbers = #tpu.dot_dimension_numbers<[1], [0], [0], [1], [0, 0, 1, 1], [], []>} : vector<8x32xf32>, vector<32x16xf32>, vector<8x16xf32> -> vector<8x16xf32>
    %c0_42 = arith.constant 0 : index
    %c0_43 = arith.constant 0 : index
    %169 = vector.load %arg11[%c0_42, %c0_43] : memref<1x16xf32, #tpu.memory_space<vmem>>, vector<1x16xf32>
    %170 = vector.broadcast %169 : vector<1x16xf32> to vector<8x16xf32>
    %171 = arith.addf %168, %170 : vector<8x16xf32>
    %c0_44 = arith.constant 0 : index
    %c0_45 = arith.constant 0 : index
    %172 = vector.load %arg12[%c0_44, %c0_45] : memref<8x16xf32, #tpu.memory_space<vmem>>, vector<8x16xf32>
    tpu.vector_store %arg12[%c0_44, %c0_45], %171 {strides = array<i32>} : memref<8x16xf32, #tpu.memory_space<vmem>>, vector<8x16xf32>,
    %c0_46 = arith.constant 0 : index
    %c0_47 = arith.constant 0 : index
    %173 = vector.load %arg13[%c0_46, %c0_47] : memref<8x32xf32, #tpu.memory_space<vmem>>, vector<8x32xf32>
    tpu.vector_store %arg13[%c0_46, %c0_47], %159 {strides = array<i32>} : memref<8x32xf32, #tpu.memory_space<vmem>>, vector<8x32xf32>,
    %c0_48 = arith.constant 0 : index
    %c0_49 = arith.constant 0 : index
    %174 = vector.load %arg14[%c0_48, %c0_49] : memref<8x32xf32, #tpu.memory_space<vmem>>, vector<8x32xf32>
    tpu.vector_store %arg14[%c0_48, %c0_49], %157 {strides = array<i32>} : memref<8x32xf32, #tpu.memory_space<vmem>>, vector<8x32xf32>,
    return
  }
}

</mosaic_0001>

<llo_original>
// kernel: recurrent_latent_encoder_fwd.1
$region0: #{recurrent_latent_encoder_fwd.1}
  #allocation0 [shape = 'u32[]', space=smem, size = 0x4, offset = 0x4, fixed_abs, tag = 'smem constant byte address 0x4 - core index']
  #allocation1 [shape = 'u32[144,128]{1,0:T(1,128)}', space=vmem, size = 0x12000, scoped, tag = 'internal scratch']
  %s0 = inlined_call_operand.vmem [shape: f32[64,8], index: 0, kind: input, shape index: {}]
  %s1 = inlined_call_operand.vmem [shape: f32[8,32], index: 1, kind: input, shape index: {}]
  %s2 = inlined_call_operand.vmem [shape: f32[8,32], index: 2, kind: input, shape index: {}]
  %s3 = inlined_call_operand.vmem [shape: f32[8,32], index: 3, kind: input, shape index: {}]
  %s4 = inlined_call_operand.vmem [shape: f32[1,32], index: 4, kind: input, shape index: {}]
  %s5 = inlined_call_operand.vmem [shape: f32[32,128], index: 5, kind: input, shape index: {}]
  %s6 = inlined_call_operand.vmem [shape: f32[32,128], index: 6, kind: input, shape index: {}]
  %s7 = inlined_call_operand.vmem [shape: f32[1,128], index: 7, kind: input, shape index: {}]
  %s8 = inlined_call_operand.vmem [shape: f32[32,32], index: 8, kind: input, shape index: {}]
  %s9 = inlined_call_operand.vmem [shape: f32[1,32], index: 9, kind: input, shape index: {}]
  %s10 = inlined_call_operand.vmem [shape: f32[32,16], index: 10, kind: input, shape index: {}]
  %s11 = inlined_call_operand.vmem [shape: f32[1,16], index: 11, kind: input, shape index: {}]
  %s12 = inlined_call_operand.vmem [shape: f32[8,16], index: 12, kind: output, shape index: {0}]
  %s13 = inlined_call_operand.vmem [shape: f32[8,32], index: 13, kind: output, shape index: {1}]
  %s14 = inlined_call_operand.vmem [shape: f32[8,32], index: 14, kind: output, shape index: {2}]
  %15 = xla_tuple %s12, %s13, %s14
  %s16 = sld [smem:[#allocation0]]
  $region74: #{recurrent_latent_encoder_fwd.1} parent=0
    _
  %s18 = ssub.s32 1, %s16
  %s19 = scalar_select 0, %s18, %s16
  // Predicated region
  $region2: #{recurrent_latent_encoder_fwd.1} parent=0 // pred_check
    _
  $region3: #{recurrent_latent_encoder_fwd.1} parent=0 // pred_check_branch
    %21 = sbr.rel (0) target = $region5
  $region4: #{recurrent_latent_encoder_fwd.1} parent=0 // pred_region
    _
  $region5: #{recurrent_latent_encoder_fwd.1} parent=0 // pred_fallthru
    _
  // Predicated region
  $region6: #{recurrent_latent_encoder_fwd.1} parent=0 // pred_check
    _
  $region7: #{recurrent_latent_encoder_fwd.1} parent=0 // pred_check_branch
    %23 = sbr.rel (0) target = $region9
  $region8: #{recurrent_latent_encoder_fwd.1} parent=0 // pred_region
    _
  $region9: #{recurrent_latent_encoder_fwd.1} parent=0 // pred_fallthru
    _
  // Predicated region
  $region10: #{recurrent_latent_encoder_fwd.1} parent=0 // pred_check
    _
  $region11: #{recurrent_latent_encoder_fwd.1} parent=0 // pred_check_branch
    %25 = sbr.rel (0) target = $region13
  $region12: #{recurrent_latent_encoder_fwd.1} parent=0 // pred_region
    _
  $region13: #{recurrent_latent_encoder_fwd.1} parent=0 // pred_fallthru
    _
  // Predicated region
  $region14: #{recurrent_latent_encoder_fwd.1} parent=0 // pred_check
    _
  $region15: #{recurrent_latent_encoder_fwd.1} parent=0 // pred_check_branch
    %27 = sbr.rel (0) target = $region17
  $region16: #{recurrent_latent_encoder_fwd.1} parent=0 // pred_region
    _
  $region17: #{recurrent_latent_encoder_fwd.1} parent=0 // pred_fallthru
    _
  // Predicated region
  $region18: #{recurrent_latent_encoder_fwd.1} parent=0 // pred_check
    _
  $region19: #{recurrent_latent_encoder_fwd.1} parent=0 // pred_check_branch
    %29 = sbr.rel (0) target = $region21
  $region20: #{recurrent_latent_encoder_fwd.1} parent=0 // pred_region
    _
  $region21: #{recurrent_latent_encoder_fwd.1} parent=0 // pred_fallthru
    _
  // Predicated region
  $region22: #{recurrent_latent_encoder_fwd.1} parent=0 // pred_check
    _
  $region23: #{recurrent_latent_encoder_fwd.1} parent=0 // pred_check_branch
    %31 = sbr.rel (0) target = $region25
  $region24: #{recurrent_latent_encoder_fwd.1} parent=0 // pred_region
    _
  $region25: #{recurrent_latent_encoder_fwd.1} parent=0 // pred_fallthru
    _
  // Predicated region
  $region26: #{recurrent_latent_encoder_fwd.1} parent=0 // pred_check
    _
  $region27: #{recurrent_latent_encoder_fwd.1} parent=0 // pred_check_branch
    %33 = sbr.rel (0) target = $region29
  $region28: #{recurrent_latent_encoder_fwd.1} parent=0 // pred_region
    _
  $region29: #{recurrent_latent_encoder_fwd.1} parent=0 // pred_fallthru
    _
  // Predicated region
  $region30: #{recurrent_latent_encoder_fwd.1} parent=0 // pred_check
    _
  $region31: #{recurrent_latent_encoder_fwd.1} parent=0 // pred_check_branch
    %35 = sbr.rel (0) target = $region33
  $region32: #{recurrent_latent_encoder_fwd.1} parent=0 // pred_region
    _
  $region33: #{recurrent_latent_encoder_fwd.1} parent=0 // pred_fallthru
    _
  // Predicated region
  $region34: #{recurrent_latent_encoder_fwd.1} parent=0 // pred_check
    _
  $region35: #{recurrent_latent_encoder_fwd.1} parent=0 // pred_check_branch
    %37 = sbr.rel (0) target = $region37
  $region36: #{recurrent_latent_encoder_fwd.1} parent=0 // pred_region
    _
  $region37: #{recurrent_latent_encoder_fwd.1} parent=0 // pred_fallthru
    _
  // Predicated region
  $region38: #{recurrent_latent_encoder_fwd.1} parent=0 // pred_check
    _
  $region39: #{recurrent_latent_encoder_fwd.1} parent=0 // pred_check_branch
    %39 = sbr.rel (0) target = $region41
  $region40: #{recurrent_latent_encoder_fwd.1} parent=0 // pred_region
    _
  $region41: #{recurrent_latent_encoder_fwd.1} parent=0 // pred_fallthru
    _
  // Predicated region
  $region42: #{recurrent_latent_encoder_fwd.1} parent=0 // pred_check
    _
  $region43: #{recurrent_latent_encoder_fwd.1} parent=0 // pred_check_branch
    %41 = sbr.rel (0) target = $region45
  $region44: #{recurrent_latent_encoder_fwd.1} parent=0 // pred_region
    _
  $region45: #{recurrent_latent_encoder_fwd.1} parent=0 // pred_fallthru
    _
  // Predicated region
  $region46: #{recurrent_latent_encoder_fwd.1} parent=0 // pred_check
    _
  $region47: #{recurrent_latent_encoder_fwd.1} parent=0 // pred_check_branch
    %43 = sbr.rel (0) target = $region49
  $region48: #{recurrent_latent_encoder_fwd.1} parent=0 // pred_region
    _
  $region49: #{recurrent_latent_encoder_fwd.1} parent=0 // pred_fallthru
    _
  %v44 = vld [vmem:[%s0] sm:$0xff]
  %v45 = vld [vmem:[%s0 + $0x8] sm:$0xff]
  %v46 = vld [vmem:[%s0 + $0x10] sm:$0xff]
  %v47 = vld [vmem:[%s0 + $0x18] sm:$0xff]
  %v48 = vld [vmem:[%s0 + $0x20] sm:$0xff]
  %v49 = vld [vmem:[%s0 + $0x28] sm:$0xff]
  %v50 = vld [vmem:[%s0 + $0x30] sm:$0xff]
  %v51 = vld [vmem:[%s0 + $0x38] sm:$0xff]
  %v52 = vld [vmem:[%s3] sm:$0xff]
  %v53 = vld [vmem:[%s4] sm:$0x1]
  %v55 = vlaneseq
  %v56 = vshrl.u32 %v55, 7
  %v57 = vsub.s32 0, %v56
  %v58 = vrot.slane %v53, %v57
  %vm60 = vcmask 64512
  %v62 = vsel %vm60, %v44, 0
  %v65 = vsel %vm60, %v45, 0
  %v68 = vsel %vm60, %v46, 0
  %v71 = vsel %vm60, %v47, 0
  %v74 = vsel %vm60, %v48, 0
  %v77 = vsel %vm60, %v49, 0
  %v80 = vsel %vm60, %v50, 0
  %v83 = vsel %vm60, %v51, 0
  %85 = vmatprep.subr.mxu0 0.0
  %86 = vmatpush1.msra.mxu0 %v52
  %87 = vmatprep.subr.mxu0 0.0
  %88 = vmatpush1.msra.mxu0 0.0
  %89 = vmatprep.subr.mxu0 0.0
  %90 = vmatpush1.msra.mxu0 0.0
  %91 = vmatprep.subr.mxu0 0.0
  %92 = vmatpush1.msra.mxu0 0.0
  %93 = vmatprep.subr.mxu0 0.0
  %94 = vmatpush1.msra.mxu0 0.0
  %95 = vmatprep.subr.mxu0 0.0
  %96 = vmatpush1.msra.mxu0 0.0
  %97 = vmatprep.subr.mxu0 0.0
  %98 = vmatpush1.msra.mxu0 0.0
  %99 = vmatprep.subr.mxu0 0.0
  %100 = vmatpush1.msra.mxu0 0.0
  %101 = vmatprep.subr.mxu0 0.0
  %102 = vmatpush1.msra.mxu0 0.0
  %103 = vmatprep.subr.mxu0 0.0
  %104 = vmatpush1.msra.mxu0 0.0
  %105 = vmatprep.subr.mxu0 0.0
  %106 = vmatpush1.msra.mxu0 0.0
  %107 = vmatprep.subr.mxu0 0.0
  %108 = vmatpush1.msra.mxu0 0.0
  %109 = vmatprep.subr.mxu0 0.0
  %110 = vmatpush1.msra.mxu0 0.0
  %111 = vmatprep.subr.mxu0 0.0
  %112 = vmatpush1.msra.mxu0 0.0
  %113 = vmatprep.subr.mxu0 0.0
  %114 = vmatpush1.msra.mxu0 0.0
  %115 = vmatprep.subr.mxu0 0.0
  %116 = vmatpush1.msra.mxu0 0.0
  %117 = vmatprep.subr.mxu0 0.0
  %118 = vmatpush1.msra.mxu0 0.0
  %119 = vmatprep.subr.mxu0 0.0
  %120 = vmatpush1.msra.mxu0 0.0
  %121 = vmatprep.subr.mxu0 0.0
  %122 = vmatpush1.msra.mxu0 0.0
  %123 = vmatprep.subr.mxu0 0.0
  %124 = vmatpush1.msra.mxu0 0.0
  %125 = vmatprep.subr.mxu0 0.0
  %126 = vmatpush1.msra.mxu0 0.0
  %127 = vmatprep.subr.mxu0 0.0
  %128 = vmatpush1.msra.mxu0 0.0
  %129 = vmatprep.subr.mxu0 0.0
  %130 = vmatpush1.msra.mxu0 0.0
  %131 = vmatprep.subr.mxu0 0.0
  %132 = vmatpush1.msra.mxu0 0.0
  %133 = vmatprep.subr.mxu0 0.0
  %134 = vmatpush1.msra.mxu0 0.0
  %135 = vmatprep.subr.mxu0 0.0
  %136 = vmatpush1.msra.mxu0 0.0
  %137 = vmatprep.subr.mxu0 0.0
  %138 = vmatpush1.msra.mxu0 0.0
  %139 = vmatprep.subr.mxu0 0.0
  %140 = vmatpush1.msra.mxu0 0.0
  %141 = vmatprep.subr.mxu0 0.0
  %142 = vmatpush1.msra.mxu0 0.0
  %143 = vmatprep.subr.mxu0 0.0
  %144 = vmatpush1.msra.mxu0 0.0
  %145 = vmatprep.subr.mxu0 0.0
  %146 = vmatpush1.msra.mxu0 0.0
  %147 = vmatprep.subr.mxu0 0.0
  %148 = vmatpush1.msra.mxu0 0.0
  %149 = vmatprep.mubr.f32.mxu0 0.0
  %150 = vmatmul.mubr.f32.gmra.mrb[0].mxu0 %v62
  %v151 = vpop.f32.mrb[0].mxu0
  %v152 = vadd.f32 %v58, %v151
  %v153 = vpop.f32.mrb[0].mxu0
  %154 = vmatprep.mubr.f32.mxu0 0.0
  %155 = vmatmul.mubr.f32.gmra.mrb[0].mxu0 %v65
  %v156 = vpop.f32.mrb[0].mxu0
  %v157 = vadd.f32 %v58, %v156
  %v158 = vpop.f32.mrb[0].mxu0
  %159 = vmatprep.mubr.f32.mxu0 0.0
  %160 = vmatmul.mubr.f32.gmra.mrb[0].mxu0 %v68
  %v161 = vpop.f32.mrb[0].mxu0
  %v162 = vadd.f32 %v58, %v161
  %v163 = vpop.f32.mrb[0].mxu0
  %164 = vmatprep.mubr.f32.mxu0 0.0
  %165 = vmatmul.mubr.f32.gmra.mrb[0].mxu0 %v71
  %v166 = vpop.f32.mrb[0].mxu0
  %v167 = vadd.f32 %v58, %v166
  %v168 = vpop.f32.mrb[0].mxu0
  %169 = vmatprep.mubr.f32.mxu0 0.0
  %170 = vmatmul.mubr.f32.gmra.mrb[0].mxu0 %v74
  %v171 = vpop.f32.mrb[0].mxu0
  %v172 = vadd.f32 %v58, %v171
  %v173 = vpop.f32.mrb[0].mxu0
  %174 = vmatprep.mubr.f32.mxu0 0.0
  %175 = vmatmul.mubr.f32.gmra.mrb[0].mxu0 %v77
  %v176 = vpop.f32.mrb[0].mxu0
  %v177 = vadd.f32 %v58, %v176
  %v178 = vpop.f32.mrb[0].mxu0
  %179 = vmatprep.mubr.f32.mxu0 0.0
  %180 = vmatmul.mubr.f32.gmra.mrb[0].mxu0 %v80
  %v181 = vpop.f32.mrb[0].mxu0
  %v182 = vadd.f32 %v58, %v181
  %v183 = vpop.f32.mrb[0].mxu0
  %184 = vmatprep.mubr.f32.mxu0 0.0
  %185 = vmatmul.mubr.f32.gmra.mrb[0].mxu0 %v83
  %v186 = vpop.f32.mrb[0].mxu0
  %v187 = vadd.f32 %v58, %v186
  %v188 = vpop.f32.mrb[0].mxu0
  %189 = vdwg.mxu0
  %v190 = vmax.f32 %v152, 0.0
  %v191 = vmax.f32 %v157, 0.0
  %v192 = vmax.f32 %v162, 0.0
  %v193 = vmax.f32 %v167, 0.0
  %v194 = vmax.f32 %v172, 0.0
  %v195 = vmax.f32 %v177, 0.0
  %v196 = vmax.f32 %v182, 0.0
  %v197 = vmax.f32 %v187, 0.0
  %v198 = vld [vmem:[%s5] sm:$0xff]
  %v199 = vld [vmem:[%s5 + $0x8] sm:$0xff]
  %v200 = vld [vmem:[%s5 + $0x10] sm:$0xff]
  %v201 = vld [vmem:[%s5 + $0x18] sm:$0xff]
  %v202 = vld [vmem:[%s7] sm:$0x1]
  %v204 = vlaneseq
  %v205 = vshrl.u32 %v204, 7
  %v206 = vsub.s32 0, %v205
  %v207 = vrot.slane %v202, %v206
  %vm209 = vcmask 261120
  %v211 = vsel %vm209, %v190, 0
  %v214 = vsel %vm209, %v191, 0
  %v217 = vsel %vm209, %v192, 0
  %v220 = vsel %vm209, %v193, 0
  %v223 = vsel %vm209, %v194, 0
  %v226 = vsel %vm209, %v195, 0
  %v229 = vsel %vm209, %v196, 0
  %v232 = vsel %vm209, %v197, 0
  %234 = vmatprep.subr.mxu0 0.0
  %235 = vmatpush1.msra.mxu0 %v198
  %236 = vmatprep.subr.mxu0 0.0
  %237 = vmatpush1.msra.mxu0 %v199
  %238 = vmatprep.subr.mxu0 0.0
  %239 = vmatpush1.msra.mxu0 %v200
  %240 = vmatprep.subr.mxu0 0.0
  %241 = vmatpush1.msra.mxu0 %v201
  %242 = vmatprep.subr.mxu0 0.0
  %243 = vmatpush1.msra.mxu0 0.0
  %244 = vmatprep.subr.mxu0 0.0
  %245 = vmatpush1.msra.mxu0 0.0
  %246 = vmatprep.subr.mxu0 0.0
  %247 = vmatpush1.msra.mxu0 0.0
  %248 = vmatprep.subr.mxu0 0.0
  %249 = vmatpush1.msra.mxu0 0.0
  %250 = vmatprep.subr.mxu0 0.0
  %251 = vmatpush1.msra.mxu0 0.0
  %252 = vmatprep.subr.mxu0 0.0
  %253 = vmatpush1.msra.mxu0 0.0
  %254 = vmatprep.subr.mxu0 0.0
  %255 = vmatpush1.msra.mxu0 0.0
  %256 = vmatprep.subr.mxu0 0.0
  %257 = vmatpush1.msra.mxu0 0.0
  %258 = vmatprep.subr.mxu0 0.0
  %259 = vmatpush1.msra.mxu0 0.0
  %260 = vmatprep.subr.mxu0 0.0
  %261 = vmatpush1.msra.mxu0 0.0
  %262 = vmatprep.subr.mxu0 0.0
  %263 = vmatpush1.msra.mxu0 0.0
  %264 = vmatprep.subr.mxu0 0.0
  %265 = vmatpush1.msra.mxu0 0.0
  %266 = vmatprep.subr.mxu0 0.0
  %267 = vmatpush1.msra.mxu0 0.0
  %268 = vmatprep.subr.mxu0 0.0
  %269 = vmatpush1.msra.mxu0 0.0
  %270 = vmatprep.subr.mxu0 0.0
  %271 = vmatpush1.msra.mxu0 0.0
  %272 = vmatprep.subr.mxu0 0.0
  %273 = vmatpush1.msra.mxu0 0.0
  %274 = vmatprep.subr.mxu0 0.0
  %275 = vmatpush1.msra.mxu0 0.0
  %276 = vmatprep.subr.mxu0 0.0
  %277 = vmatpush1.msra.mxu0 0.0
  %278 = vmatprep.subr.mxu0 0.0
  %279 = vmatpush1.msra.mxu0 0.0
  %280 = vmatprep.subr.mxu0 0.0
  %281 = vmatpush1.msra.mxu0 0.0
  %282 = vmatprep.subr.mxu0 0.0
  %283 = vmatpush1.msra.mxu0 0.0
  %284 = vmatprep.subr.mxu0 0.0
  %285 = vmatpush1.msra.mxu0 0.0
  %286 = vmatprep.subr.mxu0 0.0
  %287 = vmatpush1.msra.mxu0 0.0
  %288 = vmatprep.subr.mxu0 0.0
  %289 = vmatpush1.msra.mxu0 0.0
  %290 = vmatprep.subr.mxu0 0.0
  %291 = vmatpush1.msra.mxu0 0.0
  %292 = vmatprep.subr.mxu0 0.0
  %293 = vmatpush1.msra.mxu0 0.0
  %294 = vmatprep.subr.mxu0 0.0
  %295 = vmatpush1.msra.mxu0 0.0
  %296 = vmatprep.subr.mxu0 0.0
  %297 = vmatpush1.msra.mxu0 0.0
  %298 = vmatprep.mubr.f32.mxu0 0.0
  %299 = vmatmul.mubr.f32.gmra.mrb[0].mxu0 %v211
  %v300 = vpop.f32.mrb[0].mxu0
  %v301 = vadd.f32 %v207, %v300
  %v302 = vpop.f32.mrb[0].mxu0
  %303 = vmatprep.mubr.f32.mxu0 0.0
  %304 = vmatmul.mubr.f32.gmra.mrb[0].mxu0 %v214
  %v305 = vpop.f32.mrb[0].mxu0
  %v306 = vadd.f32 %v207, %v305
  %v307 = vpop.f32.mrb[0].mxu0
  %308 = vmatprep.mubr.f32.mxu0 0.0
  %309 = vmatmul.mubr.f32.gmra.mrb[0].mxu0 %v217
  %v310 = vpop.f32.mrb[0].mxu0
  %v311 = vadd.f32 %v207, %v310
  %v312 = vpop.f32.mrb[0].mxu0
  %313 = vmatprep.mubr.f32.mxu0 0.0
  %314 = vmatmul.mubr.f32.gmra.mrb[0].mxu0 %v220
  %v315 = vpop.f32.mrb[0].mxu0
  %v316 = vadd.f32 %v207, %v315
  %v317 = vpop.f32.mrb[0].mxu0
  %318 = vmatprep.mubr.f32.mxu0 0.0
  %319 = vmatmul.mubr.f32.gmra.mrb[0].mxu0 %v223
  %v320 = vpop.f32.mrb[0].mxu0
  %v321 = vadd.f32 %v207, %v320
  %v322 = vpop.f32.mrb[0].mxu0
  %323 = vmatprep.mubr.f32.mxu0 0.0
  %324 = vmatmul.mubr.f32.gmra.mrb[0].mxu0 %v226
  %v325 = vpop.f32.mrb[0].mxu0
  %v326 = vadd.f32 %v207, %v325
  %v327 = vpop.f32.mrb[0].mxu0
  %328 = vmatprep.mubr.f32.mxu0 0.0
  %329 = vmatmul.mubr.f32.gmra.mrb[0].mxu0 %v229
  %v330 = vpop.f32.mrb[0].mxu0
  %v331 = vadd.f32 %v207, %v330
  %v332 = vpop.f32.mrb[0].mxu0
  %333 = vmatprep.mubr.f32.mxu0 0.0
  %334 = vmatmul.mubr.f32.gmra.mrb[0].mxu0 %v232
  %v335 = vpop.f32.mrb[0].mxu0
  %v336 = vadd.f32 %v207, %v335
  %v337 = vpop.f32.mrb[0].mxu0
  %338 = vdwg.mxu0
  %v339 = vld [vmem:[%s6] sm:$0xff]
  %v340 = vld [vmem:[%s6 + $0x8] sm:$0xff]
  %v341 = vld [vmem:[%s6 + $0x10] sm:$0xff]
  %v342 = vld [vmem:[%s6 + $0x18] sm:$0xff]
  %v343 = vld [vmem:[%s1] sm:$0xff]
  %v344 = vld [vmem:[%s2] sm:$0xff]
  %v346 = vsel %vm209, %v343, 0
  %348 = vmatprep.subr.mxu0 0.0
  %349 = vmatpush1.msra.mxu0 %v339
  %350 = vmatprep.subr.mxu0 0.0
  %351 = vmatpush1.msra.mxu0 %v340
  %352 = vmatprep.subr.mxu0 0.0
  %353 = vmatpush1.msra.mxu0 %v341
  %354 = vmatprep.subr.mxu0 0.0
  %355 = vmatpush1.msra.mxu0 %v342
  %356 = vmatprep.subr.mxu0 0.0
  %357 = vmatpush1.msra.mxu0 0.0
  %358 = vmatprep.subr.mxu0 0.0
  %359 = vmatpush1.msra.mxu0 0.0
  %360 = vmatprep.subr.mxu0 0.0
  %361 = vmatpush1.msra.mxu0 0.0
  %362 = vmatprep.subr.mxu0 0.0
  %363 = vmatpush1.msra.mxu0 0.0
  %364 = vmatprep.subr.mxu0 0.0
  %365 = vmatpush1.msra.mxu0 0.0
  %366 = vmatprep.subr.mxu0 0.0
  %367 = vmatpush1.msra.mxu0 0.0
  %368 = vmatprep.subr.mxu0 0.0
  %369 = vmatpush1.msra.mxu0 0.0
  %370 = vmatprep.subr.mxu0 0.0
  %371 = vmatpush1.msra.mxu0 0.0
  %372 = vmatprep.subr.mxu0 0.0
  %373 = vmatpush1.msra.mxu0 0.0
  %374 = vmatprep.subr.mxu0 0.0
  %375 = vmatpush1.msra.mxu0 0.0
  %376 = vmatprep.subr.mxu0 0.0
  %377 = vmatpush1.msra.mxu0 0.0
  %378 = vmatprep.subr.mxu0 0.0
  %379 = vmatpush1.msra.mxu0 0.0
  %380 = vmatprep.subr.mxu0 0.0
  %381 = vmatpush1.msra.mxu0 0.0
  %382 = vmatprep.subr.mxu0 0.0
  %383 = vmatpush1.msra.mxu0 0.0
  %384 = vmatprep.subr.mxu0 0.0
  %385 = vmatpush1.msra.mxu0 0.0
  %386 = vmatprep.subr.mxu0 0.0
  %387 = vmatpush1.msra.mxu0 0.0
  %388 = vmatprep.subr.mxu0 0.0
  %389 = vmatpush1.msra.mxu0 0.0
  %390 = vmatprep.subr.mxu0 0.0
  %391 = vmatpush1.msra.mxu0 0.0
  %392 = vmatprep.subr.mxu0 0.0
  %393 = vmatpush1.msra.mxu0 0.0
  %394 = vmatprep.subr.mxu0 0.0
  %395 = vmatpush1.msra.mxu0 0.0
  %396 = vmatprep.subr.mxu0 0.0
  %397 = vmatpush1.msra.mxu0 0.0
  %398 = vmatprep.subr.mxu0 0.0
  %399 = vmatpush1.msra.mxu0 0.0
  %400 = vmatprep.subr.mxu0 0.0
  %401 = vmatpush1.msra.mxu0 0.0
  %402 = vmatprep.subr.mxu0 0.0
  %403 = vmatpush1.msra.mxu0 0.0
  %404 = vmatprep.subr.mxu0 0.0
  %405 = vmatpush1.msra.mxu0 0.0
  %406 = vmatprep.subr.mxu0 0.0
  %407 = vmatpush1.msra.mxu0 0.0
  %408 = vmatprep.subr.mxu0 0.0
  %409 = vmatpush1.msra.mxu0 0.0
  %410 = vmatprep.subr.mxu0 0.0
  %411 = vmatpush1.msra.mxu0 0.0
  %412 = vmatprep.mubr.f32.mxu0 0.0
  %413 = vmatmul.mubr.f32.gmra.mrb[0].mxu0 %v346
  %v414 = vpop.f32.mrb[0].mxu0
  %v415 = vadd.f32 0.0, %v414
  %v416 = vpop.f32.mrb[0].mxu0
  %417 = vdwg.mxu0
  %v418 = vadd.f32 %v301, %v415
  %v419 = vxor.u32 %v418, 2147483648
  %v420 = vmul.f32 %v419, 1.442695
  %v421 = vpow.pop %v420
  %v422 = vadd.f32 %v421, 1.0
  %v423 = vrcp.pop %v422
  %v424 = vmul.f32 1.0, %v423
  %v425 = vtanh.pop %v418
  %427 = vrot.lane.b32.xlu0 %v344, 32
  %v428 = vpop.permute.xlu0 %427
  %v430 = vmul.f32 %v424, %v428
  %432 = vrot.lane.b32.xlu0 %v425, 64
  %v433 = vpop.permute.xlu0 %432
  %v435 = vmul.f32 %v424, %v433
  %437 = vrot.lane.b32.xlu0 %v435, 32
  %v438 = vpop.permute.xlu0 %437
  %v440 = vadd.f32 %v430, %v438
  %v441 = vtanh.pop %v440
  %443 = vrot.lane.b32.xlu0 %v441, 64
  %v444 = vpop.permute.xlu0 %443
  %v446 = vmul.f32 %v424, %v444
  %448 = vrot.lane.b32.xlu0 %v446, 32
  %v449 = vpop.permute.xlu0 %448
  %v450 = vsel %vm209, %v449, 0
  %452 = vmatprep.subr.mxu0 0.0
  %453 = vmatpush1.msra.mxu0 %v339
  %454 = vmatprep.subr.mxu0 0.0
  %455 = vmatpush1.msra.mxu0 %v340
  %456 = vmatprep.subr.mxu0 0.0
  %457 = vmatpush1.msra.mxu0 %v341
  %458 = vmatprep.subr.mxu0 0.0
  %459 = vmatpush1.msra.mxu0 %v342
  %460 = vmatprep.subr.mxu0 0.0
  %461 = vmatpush1.msra.mxu0 0.0
  %462 = vmatprep.subr.mxu0 0.0
  %463 = vmatpush1.msra.mxu0 0.0
  %464 = vmatprep.subr.mxu0 0.0
  %465 = vmatpush1.msra.mxu0 0.0
  %466 = vmatprep.subr.mxu0 0.0
  %467 = vmatpush1.msra.mxu0 0.0
  %468 = vmatprep.subr.mxu0 0.0
  %469 = vmatpush1.msra.mxu0 0.0
  %470 = vmatprep.subr.mxu0 0.0
  %471 = vmatpush1.msra.mxu0 0.0
  %472 = vmatprep.subr.mxu0 0.0
  %473 = vmatpush1.msra.mxu0 0.0
  %474 = vmatprep.subr.mxu0 0.0
  %475 = vmatpush1.msra.mxu0 0.0
  %476 = vmatprep.subr.mxu0 0.0
  %477 = vmatpush1.msra.mxu0 0.0
  %478 = vmatprep.subr.mxu0 0.0
  %479 = vmatpush1.msra.mxu0 0.0
  %480 = vmatprep.subr.mxu0 0.0
  %481 = vmatpush1.msra.mxu0 0.0
  %482 = vmatprep.subr.mxu0 0.0
  %483 = vmatpush1.msra.mxu0 0.0
  %484 = vmatprep.subr.mxu0 0.0
  %485 = vmatpush1.msra.mxu0 0.0
  %486 = vmatprep.subr.mxu0 0.0
  %487 = vmatpush1.msra.mxu0 0.0
  %488 = vmatprep.subr.mxu0 0.0
  %489 = vmatpush1.msra.mxu0 0.0
  %490 = vmatprep.subr.mxu0 0.0
  %491 = vmatpush1.msra.mxu0 0.0
  %492 = vmatprep.subr.mxu0 0.0
  %493 = vmatpush1.msra.mxu0 0.0
  %494 = vmatprep.subr.mxu0 0.0
  %495 = vmatpush1.msra.mxu0 0.0
  %496 = vmatprep.subr.mxu0 0.0
  %497 = vmatpush1.msra.mxu0 0.0
  %498 = vmatprep.subr.mxu0 0.0
  %499 = vmatpush1.msra.mxu0 0.0
  %500 = vmatprep.subr.mxu0 0.0
  %501 = vmatpush1.msra.mxu0 0.0
  %502 = vmatprep.subr.mxu0 0.0
  %503 = vmatpush1.msra.mxu0 0.0
  %504 = vmatprep.subr.mxu0 0.0
  %505 = vmatpush1.msra.mxu0 0.0
  %506 = vmatprep.subr.mxu0 0.0
  %507 = vmatpush1.msra.mxu0 0.0
  %508 = vmatprep.subr.mxu0 0.0
  %509 = vmatpush1.msra.mxu0 0.0
  %510 = vmatprep.subr.mxu0 0.0
  %511 = vmatpush1.msra.mxu0 0.0
  %512 = vmatprep.subr.mxu0 0.0
  %513 = vmatpush1.msra.mxu0 0.0
  %514 = vmatprep.subr.mxu0 0.0
  %515 = vmatpush1.msra.mxu0 0.0
  %516 = vmatprep.mubr.f32.mxu0 0.0
  %517 = vmatmul.mubr.f32.gmra.mrb[0].mxu0 %v450
  %v518 = vpop.f32.mrb[0].mxu0
  %v519 = vadd.f32 0.0, %v518
  %v520 = vpop.f32.mrb[0].mxu0
  %521 = vdwg.mxu0
  %v522 = vadd.f32 %v306, %v519
  %v523 = vxor.u32 %v522, 2147483648
  %v524 = vmul.f32 %v523, 1.442695
  %v525 = vpow.pop %v524
  %v526 = vadd.f32 %v525, 1.0
  %v527 = vrcp.pop %v526
  %v528 = vmul.f32 1.0, %v527
  %v529 = vtanh.pop %v522
  %v530 = vmul.f32 %v528, %v440
  %532 = vrot.lane.b32.xlu0 %v529, 64
  %v533 = vpop.permute.xlu0 %532
  %v535 = vmul.f32 %v528, %v533
  %537 = vrot.lane.b32.xlu0 %v535, 32
  %v538 = vpop.permute.xlu0 %537
  %v540 = vadd.f32 %v530, %v538
  %v541 = vtanh.pop %v540
  %543 = vrot.lane.b32.xlu0 %v541, 64
  %v544 = vpop.permute.xlu0 %543
  %v546 = vmul.f32 %v528, %v544
  %548 = vrot.lane.b32.xlu0 %v546, 32
  %v549 = vpop.permute.xlu0 %548
  %v550 = vsel %vm209, %v549, 0
  %552 = vmatprep.subr.mxu0 0.0
  %553 = vmatpush1.msra.mxu0 %v339
  %554 = vmatprep.subr.mxu0 0.0
  %555 = vmatpush1.msra.mxu0 %v340
  %556 = vmatprep.subr.mxu0 0.0
  %557 = vmatpush1.msra.mxu0 %v341
  %558 = vmatprep.subr.mxu0 0.0
  %559 = vmatpush1.msra.mxu0 %v342
  %560 = vmatprep.subr.mxu0 0.0
  %561 = vmatpush1.msra.mxu0 0.0
  %562 = vmatprep.subr.mxu0 0.0
  %563 = vmatpush1.msra.mxu0 0.0
  %564 = vmatprep.subr.mxu0 0.0
  %565 = vmatpush1.msra.mxu0 0.0
  %566 = vmatprep.subr.mxu0 0.0
  %567 = vmatpush1.msra.mxu0 0.0
  %568 = vmatprep.subr.mxu0 0.0
  %569 = vmatpush1.msra.mxu0 0.0
  %570 = vmatprep.subr.mxu0 0.0
  %571 = vmatpush1.msra.mxu0 0.0
  %572 = vmatprep.subr.mxu0 0.0
  %573 = vmatpush1.msra.mxu0 0.0
  %574 = vmatprep.subr.mxu0 0.0
  %575 = vmatpush1.msra.mxu0 0.0
  %576 = vmatprep.subr.mxu0 0.0
  %577 = vmatpush1.msra.mxu0 0.0
  %578 = vmatprep.subr.mxu0 0.0
  %579 = vmatpush1.msra.mxu0 0.0
  %580 = vmatprep.subr.mxu0 0.0
  %581 = vmatpush1.msra.mxu0 0.0
  %582 = vmatprep.subr.mxu0 0.0
  %583 = vmatpush1.msra.mxu0 0.0
  %584 = vmatprep.subr.mxu0 0.0
  %585 = vmatpush1.msra.mxu0 0.0
  %586 = vmatprep.subr.mxu0 0.0
  %587 = vmatpush1.msra.mxu0 0.0
  %588 = vmatprep.subr.mxu0 0.0
  %589 = vmatpush1.msra.mxu0 0.0
  %590 = vmatprep.subr.mxu0 0.0
  %591 = vmatpush1.msra.mxu0 0.0
  %592 = vmatprep.subr.mxu0 0.0
  %593 = vmatpush1.msra.mxu0 0.0
  %594 = vmatprep.subr.mxu0 0.0
  %595 = vmatpush1.msra.mxu0 0.0
  %596 = vmatprep.subr.mxu0 0.0
  %597 = vmatpush1.msra.mxu0 0.0
  %598 = vmatprep.subr.mxu0 0.0
  %599 = vmatpush1.msra.mxu0 0.0
  %600 = vmatprep.subr.mxu0 0.0
  %601 = vmatpush1.msra.mxu0 0.0
  %602 = vmatprep.subr.mxu0 0.0
  %603 = vmatpush1.msra.mxu0 0.0
  %604 = vmatprep.subr.mxu0 0.0
  %605 = vmatpush1.msra.mxu0 0.0
  %606 = vmatprep.subr.mxu0 0.0
  %607 = vmatpush1.msra.mxu0 0.0
  %608 = vmatprep.subr.mxu0 0.0
  %609 = vmatpush1.msra.mxu0 0.0
  %610 = vmatprep.subr.mxu0 0.0
  %611 = vmatpush1.msra.mxu0 0.0
  %612 = vmatprep.subr.mxu0 0.0
  %613 = vmatpush1.msra.mxu0 0.0
  %614 = vmatprep.subr.mxu0 0.0
  %615 = vmatpush1.msra.mxu0 0.0
  %616 = vmatprep.mubr.f32.mxu0 0.0
  %617 = vmatmul.mubr.f32.gmra.mrb[0].mxu0 %v550
  %v618 = vpop.f32.mrb[0].mxu0
  %v619 = vadd.f32 0.0, %v618
  %v620 = vpop.f32.mrb[0].mxu0
  %621 = vdwg.mxu0
  %v622 = vadd.f32 %v311, %v619
  %v623 = vxor.u32 %v622, 2147483648
  %v624 = vmul.f32 %v623, 1.442695
  %v625 = vpow.pop %v624
  %v626 = vadd.f32 %v625, 1.0
  %v627 = vrcp.pop %v626
  %v628 = vmul.f32 1.0, %v627
  %v629 = vtanh.pop %v622
  %v630 = vmul.f32 %v628, %v540
  %632 = vrot.lane.b32.xlu0 %v629, 64
  %v633 = vpop.permute.xlu0 %632
  %v635 = vmul.f32 %v628, %v633
  %637 = vrot.lane.b32.xlu0 %v635, 32
  %v638 = vpop.permute.xlu0 %637
  %v640 = vadd.f32 %v630, %v638
  %v641 = vtanh.pop %v640
  %643 = vrot.lane.b32.xlu0 %v641, 64
  %v644 = vpop.permute.xlu0 %643
  %v646 = vmul.f32 %v628, %v644
  %648 = vrot.lane.b32.xlu0 %v646, 32
  %v649 = vpop.permute.xlu0 %648
  %v650 = vsel %vm209, %v649, 0
  %652 = vmatprep.subr.mxu0 0.0
  %653 = vmatpush1.msra.mxu0 %v339
  %654 = vmatprep.subr.mxu0 0.0
  %655 = vmatpush1.msra.mxu0 %v340
  %656 = vmatprep.subr.mxu0 0.0
  %657 = vmatpush1.msra.mxu0 %v341
  %658 = vmatprep.subr.mxu0 0.0
  %659 = vmatpush1.msra.mxu0 %v342
  %660 = vmatprep.subr.mxu0 0.0
  %661 = vmatpush1.msra.mxu0 0.0
  %662 = vmatprep.subr.mxu0 0.0
  %663 = vmatpush1.msra.mxu0 0.0
  %664 = vmatprep.subr.mxu0 0.0
  %665 = vmatpush1.msra.mxu0 0.0
  %666 = vmatprep.subr.mxu0 0.0
  %667 = vmatpush1.msra.mxu0 0.0
  %668 = vmatprep.subr.mxu0 0.0
  %669 = vmatpush1.msra.mxu0 0.0
  %670 = vmatprep.subr.mxu0 0.0
  %671 = vmatpush1.msra.mxu0 0.0
  %672 = vmatprep.subr.mxu0 0.0
  %673 = vmatpush1.msra.mxu0 0.0
  %674 = vmatprep.subr.mxu0 0.0
  %675 = vmatpush1.msra.mxu0 0.0
  %676 = vmatprep.subr.mxu0 0.0
  %677 = vmatpush1.msra.mxu0 0.0
  %678 = vmatprep.subr.mxu0 0.0
  %679 = vmatpush1.msra.mxu0 0.0
  %680 = vmatprep.subr.mxu0 0.0
  %681 = vmatpush1.msra.mxu0 0.0
  %682 = vmatprep.subr.mxu0 0.0
  %683 = vmatpush1.msra.mxu0 0.0
  %684 = vmatprep.subr.mxu0 0.0
  %685 = vmatpush1.msra.mxu0 0.0
  %686 = vmatprep.subr.mxu0 0.0
  %687 = vmatpush1.msra.mxu0 0.0
  %688 = vmatprep.subr.mxu0 0.0
  %689 = vmatpush1.msra.mxu0 0.0
  %690 = vmatprep.subr.mxu0 0.0
  %691 = vmatpush1.msra.mxu0 0.0
  %692 = vmatprep.subr.mxu0 0.0
  %693 = vmatpush1.msra.mxu0 0.0
  %694 = vmatprep.subr.mxu0 0.0
  %695 = vmatpush1.msra.mxu0 0.0
  %696 = vmatprep.subr.mxu0 0.0
  %697 = vmatpush1.msra.mxu0 0.0
  %698 = vmatprep.subr.mxu0 0.0
  %699 = vmatpush1.msra.mxu0 0.0
  %700 = vmatprep.subr.mxu0 0.0
  %701 = vmatpush1.msra.mxu0 0.0
  %702 = vmatprep.subr.mxu0 0.0
  %703 = vmatpush1.msra.mxu0 0.0
  %704 = vmatprep.subr.mxu0 0.0
  %705 = vmatpush1.msra.mxu0 0.0
  %706 = vmatprep.subr.mxu0 0.0
  %707 = vmatpush1.msra.mxu0 0.0
  %708 = vmatprep.subr.mxu0 0.0
  %709 = vmatpush1.msra.mxu0 0.0
  %710 = vmatprep.subr.mxu0 0.0
  %711 = vmatpush1.msra.mxu0 0.0
  %712 = vmatprep.subr.mxu0 0.0
  %713 = vmatpush1.msra.mxu0 0.0
  %714 = vmatprep.subr.mxu0 0.0
  %715 = vmatpush1.msra.mxu0 0.0
  %716 = vmatprep.mubr.f32.mxu0 0.0
  %717 = vmatmul.mubr.f32.gmra.mrb[0].mxu0 %v650
  %v718 = vpop.f32.mrb[0].mxu0
  %v719 = vadd.f32 0.0, %v718
  %v720 = vpop.f32.mrb[0].mxu0
  %721 = vdwg.mxu0
  %v722 = vadd.f32 %v316, %v719
  %v723 = vxor.u32 %v722, 2147483648
  %v724 = vmul.f32 %v723, 1.442695
  %v725 = vpow.pop %v724
  %v726 = vadd.f32 %v725, 1.0
  %v727 = vrcp.pop %v726
  %v728 = vmul.f32 1.0, %v727
  %v729 = vtanh.pop %v722
  %v730 = vmul.f32 %v728, %v640
  %732 = vrot.lane.b32.xlu0 %v729, 64
  %v733 = vpop.permute.xlu0 %732
  %v735 = vmul.f32 %v728, %v733
  %737 = vrot.lane.b32.xlu0 %v735, 32
  %v738 = vpop.permute.xlu0 %737
  %v740 = vadd.f32 %v730, %v738
  %v741 = vtanh.pop %v740
  %743 = vrot.lane.b32.xlu0 %v741, 64
  %v744 = vpop.permute.xlu0 %743
  %v746 = vmul.f32 %v728, %v744
  %748 = vrot.lane.b32.xlu0 %v746, 32
  %v749 = vpop.permute.xlu0 %748
  %v750 = vsel %vm209, %v749, 0
  %752 = vmatprep.subr.mxu0 0.0
  %753 = vmatpush1.msra.mxu0 %v339
  %754 = vmatprep.subr.mxu0 0.0
  %755 = vmatpush1.msra.mxu0 %v340
  %756 = vmatprep.subr.mxu0 0.0
  %757 = vmatpush1.msra.mxu0 %v341
  %758 = vmatprep.subr.mxu0 0.0
  %759 = vmatpush1.msra.mxu0 %v342
  %760 = vmatprep.subr.mxu0 0.0
  %761 = vmatpush1.msra.mxu0 0.0
  %762 = vmatprep.subr.mxu0 0.0
  %763 = vmatpush1.msra.mxu0 0.0
  %764 = vmatprep.subr.mxu0 0.0
  %765 = vmatpush1.msra.mxu0 0.0
  %766 = vmatprep.subr.mxu0 0.0
  %767 = vmatpush1.msra.mxu0 0.0
  %768 = vmatprep.subr.mxu0 0.0
  %769 = vmatpush1.msra.mxu0 0.0
  %770 = vmatprep.subr.mxu0 0.0
  %771 = vmatpush1.msra.mxu0 0.0
  %772 = vmatprep.subr.mxu0 0.0
  %773 = vmatpush1.msra.mxu0 0.0
  %774 = vmatprep.subr.mxu0 0.0
  %775 = vmatpush1.msra.mxu0 0.0
  %776 = vmatprep.subr.mxu0 0.0
  %777 = vmatpush1.msra.mxu0 0.0
  %778 = vmatprep.subr.mxu0 0.0
  %779 = vmatpush1.msra.mxu0 0.0
  %780 = vmatprep.subr.mxu0 0.0
  %781 = vmatpush1.msra.mxu0 0.0
  %782 = vmatprep.subr.mxu0 0.0
  %783 = vmatpush1.msra.mxu0 0.0
  %784 = vmatprep.subr.mxu0 0.0
  %785 = vmatpush1.msra.mxu0 0.0
  %786 = vmatprep.subr.mxu0 0.0
  %787 = vmatpush1.msra.mxu0 0.0
  %788 = vmatprep.subr.mxu0 0.0
  %789 = vmatpush1.msra.mxu0 0.0
  %790 = vmatprep.subr.mxu0 0.0
  %791 = vmatpush1.msra.mxu0 0.0
  %792 = vmatprep.subr.mxu0 0.0
  %793 = vmatpush1.msra.mxu0 0.0
  %794 = vmatprep.subr.mxu0 0.0
  %795 = vmatpush1.msra.mxu0 0.0
  %796 = vmatprep.subr.mxu0 0.0
  %797 = vmatpush1.msra.mxu0 0.0
  %798 = vmatprep.subr.mxu0 0.0
  %799 = vmatpush1.msra.mxu0 0.0
  %800 = vmatprep.subr.mxu0 0.0
  %801 = vmatpush1.msra.mxu0 0.0
  %802 = vmatprep.subr.mxu0 0.0
  %803 = vmatpush1.msra.mxu0 0.0
  %804 = vmatprep.subr.mxu0 0.0
  %805 = vmatpush1.msra.mxu0 0.0
  %806 = vmatprep.subr.mxu0 0.0
  %807 = vmatpush1.msra.mxu0 0.0
  %808 = vmatprep.subr.mxu0 0.0
  %809 = vmatpush1.msra.mxu0 0.0
  %810 = vmatprep.subr.mxu0 0.0
  %811 = vmatpush1.msra.mxu0 0.0
  %812 = vmatprep.subr.mxu0 0.0
  %813 = vmatpush1.msra.mxu0 0.0
  %814 = vmatprep.subr.mxu0 0.0
  %815 = vmatpush1.msra.mxu0 0.0
  %816 = vmatprep.mubr.f32.mxu0 0.0
  %817 = vmatmul.mubr.f32.gmra.mrb[0].mxu0 %v750
  %v818 = vpop.f32.mrb[0].mxu0
  %v819 = vadd.f32 0.0, %v818
  %v820 = vpop.f32.mrb[0].mxu0
  %821 = vdwg.mxu0
  %v822 = vadd.f32 %v321, %v819
  %v823 = vxor.u32 %v822, 2147483648
  %v824 = vmul.f32 %v823, 1.442695
  %v825 = vpow.pop %v824
  %v826 = vadd.f32 %v825, 1.0
  %v827 = vrcp.pop %v826
  %v828 = vmul.f32 1.0, %v827
  %v829 = vtanh.pop %v822
  %v830 = vmul.f32 %v828, %v740
  %832 = vrot.lane.b32.xlu0 %v829, 64
  %v833 = vpop.permute.xlu0 %832
  %v835 = vmul.f32 %v828, %v833
  %837 = vrot.lane.b32.xlu0 %v835, 32
  %v838 = vpop.permute.xlu0 %837
  %v840 = vadd.f32 %v830, %v838
  %v841 = vtanh.pop %v840
  %843 = vrot.lane.b32.xlu0 %v841, 64
  %v844 = vpop.permute.xlu0 %843
  %v846 = vmul.f32 %v828, %v844
  %848 = vrot.lane.b32.xlu0 %v846, 32
  %v849 = vpop.permute.xlu0 %848
  %v850 = vsel %vm209, %v849, 0
  %852 = vmatprep.subr.mxu0 0.0
  %853 = vmatpush1.msra.mxu0 %v339
  %854 = vmatprep.subr.mxu0 0.0
  %855 = vmatpush1.msra.mxu0 %v340
  %856 = vmatprep.subr.mxu0 0.0
  %857 = vmatpush1.msra.mxu0 %v341
  %858 = vmatprep.subr.mxu0 0.0
  %859 = vmatpush1.msra.mxu0 %v342
  %860 = vmatprep.subr.mxu0 0.0
  %861 = vmatpush1.msra.mxu0 0.0
  %862 = vmatprep.subr.mxu0 0.0
  %863 = vmatpush1.msra.mxu0 0.0
  %864 = vmatprep.subr.mxu0 0.0
  %865 = vmatpush1.msra.mxu0 0.0
  %866 = vmatprep.subr.mxu0 0.0
  %867 = vmatpush1.msra.mxu0 0.0
  %868 = vmatprep.subr.mxu0 0.0
  %869 = vmatpush1.msra.mxu0 0.0
  %870 = vmatprep.subr.mxu0 0.0
  %871 = vmatpush1.msra.mxu0 0.0
  %872 = vmatprep.subr.mxu0 0.0
  %873 = vmatpush1.msra.mxu0 0.0
  %874 = vmatprep.subr.mxu0 0.0
  %875 = vmatpush1.msra.mxu0 0.0
  %876 = vmatprep.subr.mxu0 0.0
  %877 = vmatpush1.msra.mxu0 0.0
  %878 = vmatprep.subr.mxu0 0.0
  %879 = vmatpush1.msra.mxu0 0.0
  %880 = vmatprep.subr.mxu0 0.0
  %881 = vmatpush1.msra.mxu0 0.0
  %882 = vmatprep.subr.mxu0 0.0
  %883 = vmatpush1.msra.mxu0 0.0
  %884 = vmatprep.subr.mxu0 0.0
  %885 = vmatpush1.msra.mxu0 0.0
  %886 = vmatprep.subr.mxu0 0.0
  %887 = vmatpush1.msra.mxu0 0.0
  %888 = vmatprep.subr.mxu0 0.0
  %889 = vmatpush1.msra.mxu0 0.0
  %890 = vmatprep.subr.mxu0 0.0
  %891 = vmatpush1.msra.mxu0 0.0
  %892 = vmatprep.subr.mxu0 0.0
  %893 = vmatpush1.msra.mxu0 0.0
  %894 = vmatprep.subr.mxu0 0.0
  %895 = vmatpush1.msra.mxu0 0.0
  %896 = vmatprep.subr.mxu0 0.0
  %897 = vmatpush1.msra.mxu0 0.0
  %898 = vmatprep.subr.mxu0 0.0
  %899 = vmatpush1.msra.mxu0 0.0
  %900 = vmatprep.subr.mxu0 0.0
  %901 = vmatpush1.msra.mxu0 0.0
  %902 = vmatprep.subr.mxu0 0.0
  %903 = vmatpush1.msra.mxu0 0.0
  %904 = vmatprep.subr.mxu0 0.0
  %905 = vmatpush1.msra.mxu0 0.0
  %906 = vmatprep.subr.mxu0 0.0
  %907 = vmatpush1.msra.mxu0 0.0
  %908 = vmatprep.subr.mxu0 0.0
  %909 = vmatpush1.msra.mxu0 0.0
  %910 = vmatprep.subr.mxu0 0.0
  %911 = vmatpush1.msra.mxu0 0.0
  %912 = vmatprep.subr.mxu0 0.0
  %913 = vmatpush1.msra.mxu0 0.0
  %914 = vmatprep.subr.mxu0 0.0
  %915 = vmatpush1.msra.mxu0 0.0
  %916 = vmatprep.mubr.f32.mxu0 0.0
  %917 = vmatmul.mubr.f32.gmra.mrb[0].mxu0 %v850
  %v918 = vpop.f32.mrb[0].mxu0
  %v919 = vadd.f32 0.0, %v918
  %v920 = vpop.f32.mrb[0].mxu0
  %921 = vdwg.mxu0
  %v922 = vadd.f32 %v326, %v919
  %v923 = vxor.u32 %v922, 2147483648
  %v924 = vmul.f32 %v923, 1.442695
  %v925 = vpow.pop %v924
  %v926 = vadd.f32 %v925, 1.0
  %v927 = vrcp.pop %v926
  %v928 = vmul.f32 1.0, %v927
  %v929 = vtanh.pop %v922
  %v930 = vmul.f32 %v928, %v840
  %932 = vrot.lane.b32.xlu0 %v929, 64
  %v933 = vpop.permute.xlu0 %932
  %v935 = vmul.f32 %v928, %v933
  %937 = vrot.lane.b32.xlu0 %v935, 32
  %v938 = vpop.permute.xlu0 %937
  %v940 = vadd.f32 %v930, %v938
  %v941 = vtanh.pop %v940
  %943 = vrot.lane.b32.xlu0 %v941, 64
  %v944 = vpop.permute.xlu0 %943
  %v946 = vmul.f32 %v928, %v944
  %948 = vrot.lane.b32.xlu0 %v946, 32
  %v949 = vpop.permute.xlu0 %948
  %v950 = vsel %vm209, %v949, 0
  %952 = vmatprep.subr.mxu0 0.0
  %953 = vmatpush1.msra.mxu0 %v339
  %954 = vmatprep.subr.mxu0 0.0
  %955 = vmatpush1.msra.mxu0 %v340
  %956 = vmatprep.subr.mxu0 0.0
  %957 = vmatpush1.msra.mxu0 %v341
  %958 = vmatprep.subr.mxu0 0.0
  %959 = vmatpush1.msra.mxu0 %v342
  %960 = vmatprep.subr.mxu0 0.0
  %961 = vmatpush1.msra.mxu0 0.0
  %962 = vmatprep.subr.mxu0 0.0
  %963 = vmatpush1.msra.mxu0 0.0
  %964 = vmatprep.subr.mxu0 0.0
  %965 = vmatpush1.msra.mxu0 0.0
  %966 = vmatprep.subr.mxu0 0.0
  %967 = vmatpush1.msra.mxu0 0.0
  %968 = vmatprep.subr.mxu0 0.0
  %969 = vmatpush1.msra.mxu0 0.0
  %970 = vmatprep.subr.mxu0 0.0
  %971 = vmatpush1.msra.mxu0 0.0
  %972 = vmatprep.subr.mxu0 0.0
  %973 = vmatpush1.msra.mxu0 0.0
  %974 = vmatprep.subr.mxu0 0.0
  %975 = vmatpush1.msra.mxu0 0.0
  %976 = vmatprep.subr.mxu0 0.0
  %977 = vmatpush1.msra.mxu0 0.0
  %978 = vmatprep.subr.mxu0 0.0
  %979 = vmatpush1.msra.mxu0 0.0
  %980 = vmatprep.subr.mxu0 0.0
  %981 = vmatpush1.msra.mxu0 0.0
  %982 = vmatprep.subr.mxu0 0.0
  %983 = vmatpush1.msra.mxu0 0.0
  %984 = vmatprep.subr.mxu0 0.0
  %985 = vmatpush1.msra.mxu0 0.0
  %986 = vmatprep.subr.mxu0 0.0
  %987 = vmatpush1.msra.mxu0 0.0
  %988 = vmatprep.subr.mxu0 0.0
  %989 = vmatpush1.msra.mxu0 0.0
  %990 = vmatprep.subr.mxu0 0.0
  %991 = vmatpush1.msra.mxu0 0.0
  %992 = vmatprep.subr.mxu0 0.0
  %993 = vmatpush1.msra.mxu0 0.0
  %994 = vmatprep.subr.mxu0 0.0
  %995 = vmatpush1.msra.mxu0 0.0
  %996 = vmatprep.subr.mxu0 0.0
  %997 = vmatpush1.msra.mxu0 0.0
  %998 = vmatprep.subr.mxu0 0.0
  %999 = vmatpush1.msra.mxu0 0.0
  %1000 = vmatprep.subr.mxu0 0.0
  %1001 = vmatpush1.msra.mxu0 0.0
  %1002 = vmatprep.subr.mxu0 0.0
  %1003 = vmatpush1.msra.mxu0 0.0
  %1004 = vmatprep.subr.mxu0 0.0
  %1005 = vmatpush1.msra.mxu0 0.0
  %1006 = vmatprep.subr.mxu0 0.0
  %1007 = vmatpush1.msra.mxu0 0.0
  %1008 = vmatprep.subr.mxu0 0.0
  %1009 = vmatpush1.msra.mxu0 0.0
  %1010 = vmatprep.subr.mxu0 0.0
  %1011 = vmatpush1.msra.mxu0 0.0
  %1012 = vmatprep.subr.mxu0 0.0
  %1013 = vmatpush1.msra.mxu0 0.0
  %1014 = vmatprep.subr.mxu0 0.0
  %1015 = vmatpush1.msra.mxu0 0.0
  %1016 = vmatprep.mubr.f32.mxu0 0.0
  %1017 = vmatmul.mubr.f32.gmra.mrb[0].mxu0 %v950
  %v1018 = vpop.f32.mrb[0].mxu0
  %v1019 = vadd.f32 0.0, %v1018
  %v1020 = vpop.f32.mrb[0].mxu0
  %1021 = vdwg.mxu0
  %v1022 = vadd.f32 %v331, %v1019
  %v1023 = vxor.u32 %v1022, 2147483648
  %v1024 = vmul.f32 %v1023, 1.442695
  %v1025 = vpow.pop %v1024
  %v1026 = vadd.f32 %v1025, 1.0
  %v1027 = vrcp.pop %v1026
  %v1028 = vmul.f32 1.0, %v1027
  %v1029 = vtanh.pop %v1022
  %v1030 = vmul.f32 %v1028, %v940
  %1032 = vrot.lane.b32.xlu0 %v1029, 64
  %v1033 = vpop.permute.xlu0 %1032
  %v1035 = vmul.f32 %v1028, %v1033
  %1037 = vrot.lane.b32.xlu0 %v1035, 32
  %v1038 = vpop.permute.xlu0 %1037
  %v1040 = vadd.f32 %v1030, %v1038
  %v1041 = vtanh.pop %v1040
  %1043 = vrot.lane.b32.xlu0 %v1041, 64
  %v1044 = vpop.permute.xlu0 %1043
  %v1046 = vmul.f32 %v1028, %v1044
  %1048 = vrot.lane.b32.xlu0 %v1046, 32
  %v1049 = vpop.permute.xlu0 %1048
  %v1050 = vsel %vm209, %v1049, 0
  %1052 = vmatprep.subr.mxu0 0.0
  %1053 = vmatpush1.msra.mxu0 %v339
  %1054 = vmatprep.subr.mxu0 0.0
  %1055 = vmatpush1.msra.mxu0 %v340
  %1056 = vmatprep.subr.mxu0 0.0
  %1057 = vmatpush1.msra.mxu0 %v341
  %1058 = vmatprep.subr.mxu0 0.0
  %1059 = vmatpush1.msra.mxu0 %v342
  %1060 = vmatprep.subr.mxu0 0.0
  %1061 = vmatpush1.msra.mxu0 0.0
  %1062 = vmatprep.subr.mxu0 0.0
  %1063 = vmatpush1.msra.mxu0 0.0
  %1064 = vmatprep.subr.mxu0 0.0
  %1065 = vmatpush1.msra.mxu0 0.0
  %1066 = vmatprep.subr.mxu0 0.0
  %1067 = vmatpush1.msra.mxu0 0.0
  %1068 = vmatprep.subr.mxu0 0.0
  %1069 = vmatpush1.msra.mxu0 0.0
  %1070 = vmatprep.subr.mxu0 0.0
  %1071 = vmatpush1.msra.mxu0 0.0
  %1072 = vmatprep.subr.mxu0 0.0
  %1073 = vmatpush1.msra.mxu0 0.0
  %1074 = vmatprep.subr.mxu0 0.0
  %1075 = vmatpush1.msra.mxu0 0.0
  %1076 = vmatprep.subr.mxu0 0.0
  %1077 = vmatpush1.msra.mxu0 0.0
  %1078 = vmatprep.subr.mxu0 0.0
  %1079 = vmatpush1.msra.mxu0 0.0
  %1080 = vmatprep.subr.mxu0 0.0
  %1081 = vmatpush1.msra.mxu0 0.0
  %1082 = vmatprep.subr.mxu0 0.0
  %1083 = vmatpush1.msra.mxu0 0.0
  %1084 = vmatprep.subr.mxu0 0.0
  %1085 = vmatpush1.msra.mxu0 0.0
  %1086 = vmatprep.subr.mxu0 0.0
  %1087 = vmatpush1.msra.mxu0 0.0
  %1088 = vmatprep.subr.mxu0 0.0
  %1089 = vmatpush1.msra.mxu0 0.0
  %1090 = vmatprep.subr.mxu0 0.0
  %1091 = vmatpush1.msra.mxu0 0.0
  %1092 = vmatprep.subr.mxu0 0.0
  %1093 = vmatpush1.msra.mxu0 0.0
  %1094 = vmatprep.subr.mxu0 0.0
  %1095 = vmatpush1.msra.mxu0 0.0
  %1096 = vmatprep.subr.mxu0 0.0
  %1097 = vmatpush1.msra.mxu0 0.0
  %1098 = vmatprep.subr.mxu0 0.0
  %1099 = vmatpush1.msra.mxu0 0.0
  %1100 = vmatprep.subr.mxu0 0.0
  %1101 = vmatpush1.msra.mxu0 0.0
  %1102 = vmatprep.subr.mxu0 0.0
  %1103 = vmatpush1.msra.mxu0 0.0
  %1104 = vmatprep.subr.mxu0 0.0
  %1105 = vmatpush1.msra.mxu0 0.0
  %1106 = vmatprep.subr.mxu0 0.0
  %1107 = vmatpush1.msra.mxu0 0.0
  %1108 = vmatprep.subr.mxu0 0.0
  %1109 = vmatpush1.msra.mxu0 0.0
  %1110 = vmatprep.subr.mxu0 0.0
  %1111 = vmatpush1.msra.mxu0 0.0
  %1112 = vmatprep.subr.mxu0 0.0
  %1113 = vmatpush1.msra.mxu0 0.0
  %1114 = vmatprep.subr.mxu0 0.0
  %1115 = vmatpush1.msra.mxu0 0.0
  %1116 = vmatprep.mubr.f32.mxu0 0.0
  %1117 = vmatmul.mubr.f32.gmra.mrb[0].mxu0 %v1050
  %v1118 = vpop.f32.mrb[0].mxu0
  %v1119 = vadd.f32 0.0, %v1118
  %v1120 = vpop.f32.mrb[0].mxu0
  %1121 = vdwg.mxu0
  %v1122 = vadd.f32 %v336, %v1119
  %v1123 = vxor.u32 %v1122, 2147483648
  %v1124 = vmul.f32 %v1123, 1.442695
  %v1125 = vpow.pop %v1124
  %v1126 = vadd.f32 %v1125, 1.0
  %v1127 = vrcp.pop %v1126
  %v1128 = vmul.f32 1.0, %v1127
  %v1129 = vtanh.pop %v1122
  %v1130 = vmul.f32 %v1128, %v1040
  %1132 = vrot.lane.b32.xlu0 %v1129, 64
  %v1133 = vpop.permute.xlu0 %1132
  %v1135 = vmul.f32 %v1128, %v1133
  %1137 = vrot.lane.b32.xlu0 %v1135, 32
  %v1138 = vpop.permute.xlu0 %1137
  %v1140 = vadd.f32 %v1130, %v1138
  %v1141 = vtanh.pop %v1140
  %1143 = vrot.lane.b32.xlu0 %v1141, 64
  %v1144 = vpop.permute.xlu0 %1143
  %v1146 = vmul.f32 %v1128, %v1144
  %v1147 = vld [vmem:[%s8] sm:$0xff]
  %v1148 = vld [vmem:[%s8 + $0x8] sm:$0xff]
  %v1149 = vld [vmem:[%s8 + $0x10] sm:$0xff]
  %v1150 = vld [vmem:[%s8 + $0x18] sm:$0xff]
  %v1151 = vld [vmem:[%s9] sm:$0x1]
  %v1153 = vlaneseq
  %v1154 = vshrl.u32 %v1153, 7
  %v1155 = vsub.s32 0, %v1154
  %v1156 = vrot.slane %v1151, %v1155
  %1159 = vrot.lane.b32.xlu0 %v1146, 32
  %v1160 = vpop.permute.xlu0 %1159
  %v1161 = vsel %vm209, %v1160, 0
  %1163 = vmatprep.subr.mxu0 0.0
  %1164 = vmatpush1.msra.mxu0 %v1147
  %1165 = vmatprep.subr.mxu0 0.0
  %1166 = vmatpush1.msra.mxu0 %v1148
  %1167 = vmatprep.subr.mxu0 0.0
  %1168 = vmatpush1.msra.mxu0 %v1149
  %1169 = vmatprep.subr.mxu0 0.0
  %1170 = vmatpush1.msra.mxu0 %v1150
  %1171 = vmatprep.subr.mxu0 0.0
  %1172 = vmatpush1.msra.mxu0 0.0
  %1173 = vmatprep.subr.mxu0 0.0
  %1174 = vmatpush1.msra.mxu0 0.0
  %1175 = vmatprep.subr.mxu0 0.0
  %1176 = vmatpush1.msra.mxu0 0.0
  %1177 = vmatprep.subr.mxu0 0.0
  %1178 = vmatpush1.msra.mxu0 0.0
  %1179 = vmatprep.subr.mxu0 0.0
  %1180 = vmatpush1.msra.mxu0 0.0
  %1181 = vmatprep.subr.mxu0 0.0
  %1182 = vmatpush1.msra.mxu0 0.0
  %1183 = vmatprep.subr.mxu0 0.0
  %1184 = vmatpush1.msra.mxu0 0.0
  %1185 = vmatprep.subr.mxu0 0.0
  %1186 = vmatpush1.msra.mxu0 0.0
  %1187 = vmatprep.subr.mxu0 0.0
  %1188 = vmatpush1.msra.mxu0 0.0
  %1189 = vmatprep.subr.mxu0 0.0
  %1190 = vmatpush1.msra.mxu0 0.0
  %1191 = vmatprep.subr.mxu0 0.0
  %1192 = vmatpush1.msra.mxu0 0.0
  %1193 = vmatprep.subr.mxu0 0.0
  %1194 = vmatpush1.msra.mxu0 0.0
  %1195 = vmatprep.subr.mxu0 0.0
  %1196 = vmatpush1.msra.mxu0 0.0
  %1197 = vmatprep.subr.mxu0 0.0
  %1198 = vmatpush1.msra.mxu0 0.0
  %1199 = vmatprep.subr.mxu0 0.0
  %1200 = vmatpush1.msra.mxu0 0.0
  %1201 = vmatprep.subr.mxu0 0.0
  %1202 = vmatpush1.msra.mxu0 0.0
  %1203 = vmatprep.subr.mxu0 0.0
  %1204 = vmatpush1.msra.mxu0 0.0
  %1205 = vmatprep.subr.mxu0 0.0
  %1206 = vmatpush1.msra.mxu0 0.0
  %1207 = vmatprep.subr.mxu0 0.0
  %1208 = vmatpush1.msra.mxu0 0.0
  %1209 = vmatprep.subr.mxu0 0.0
  %1210 = vmatpush1.msra.mxu0 0.0
  %1211 = vmatprep.subr.mxu0 0.0
  %1212 = vmatpush1.msra.mxu0 0.0
  %1213 = vmatprep.subr.mxu0 0.0
  %1214 = vmatpush1.msra.mxu0 0.0
  %1215 = vmatprep.subr.mxu0 0.0
  %1216 = vmatpush1.msra.mxu0 0.0
  %1217 = vmatprep.subr.mxu0 0.0
  %1218 = vmatpush1.msra.mxu0 0.0
  %1219 = vmatprep.subr.mxu0 0.0
  %1220 = vmatpush1.msra.mxu0 0.0
  %1221 = vmatprep.subr.mxu0 0.0
  %1222 = vmatpush1.msra.mxu0 0.0
  %1223 = vmatprep.subr.mxu0 0.0
  %1224 = vmatpush1.msra.mxu0 0.0
  %1225 = vmatprep.subr.mxu0 0.0
  %1226 = vmatpush1.msra.mxu0 0.0
  %1227 = vmatprep.mubr.f32.mxu0 0.0
  %1228 = vmatmul.mubr.f32.gmra.mrb[0].mxu0 %v1161
  %v1229 = vpop.f32.mrb[0].mxu0
  %v1230 = vadd.f32 %v1156, %v1229
  %v1231 = vpop.f32.mrb[0].mxu0
  %1232 = vdwg.mxu0
  %v1233 = vmax.f32 %v1230, 0.0
  %v1234 = vld [vmem:[%s10] sm:$0xff]
  %v1235 = vld [vmem:[%s10 + $0x8] sm:$0xff]
  %v1236 = vld [vmem:[%s10 + $0x10] sm:$0xff]
  %v1237 = vld [vmem:[%s10 + $0x18] sm:$0xff]
  %v1238 = vld [vmem:[%s11] sm:$0x1]
  %v1240 = vlaneseq
  %v1241 = vshrl.u32 %v1240, 7
  %v1242 = vsub.s32 0, %v1241
  %v1243 = vrot.slane %v1238, %v1242
  %v1246 = vsel %vm209, %v1233, 0
  %1248 = vmatprep.subr.mxu0 0.0
  %1249 = vmatpush1.msra.mxu0 %v1234
  %1250 = vmatprep.subr.mxu0 0.0
  %1251 = vmatpush1.msra.mxu0 %v1235
  %1252 = vmatprep.subr.mxu0 0.0
  %1253 = vmatpush1.msra.mxu0 %v1236
  %1254 = vmatprep.subr.mxu0 0.0
  %1255 = vmatpush1.msra.mxu0 %v1237
  %1256 = vmatprep.subr.mxu0 0.0
  %1257 = vmatpush1.msra.mxu0 0.0
  %1258 = vmatprep.subr.mxu0 0.0
  %1259 = vmatpush1.msra.mxu0 0.0
  %1260 = vmatprep.subr.mxu0 0.0
  %1261 = vmatpush1.msra.mxu0 0.0
  %1262 = vmatprep.subr.mxu0 0.0
  %1263 = vmatpush1.msra.mxu0 0.0
  %1264 = vmatprep.subr.mxu0 0.0
  %1265 = vmatpush1.msra.mxu0 0.0
  %1266 = vmatprep.subr.mxu0 0.0
  %1267 = vmatpush1.msra.mxu0 0.0
  %1268 = vmatprep.subr.mxu0 0.0
  %1269 = vmatpush1.msra.mxu0 0.0
  %1270 = vmatprep.subr.mxu0 0.0
  %1271 = vmatpush1.msra.mxu0 0.0
  %1272 = vmatprep.subr.mxu0 0.0
  %1273 = vmatpush1.msra.mxu0 0.0
  %1274 = vmatprep.subr.mxu0 0.0
  %1275 = vmatpush1.msra.mxu0 0.0
  %1276 = vmatprep.subr.mxu0 0.0
  %1277 = vmatpush1.msra.mxu0 0.0
  %1278 = vmatprep.subr.mxu0 0.0
  %1279 = vmatpush1.msra.mxu0 0.0
  %1280 = vmatprep.subr.mxu0 0.0
  %1281 = vmatpush1.msra.mxu0 0.0
  %1282 = vmatprep.subr.mxu0 0.0
  %1283 = vmatpush1.msra.mxu0 0.0
  %1284 = vmatprep.subr.mxu0 0.0
  %1285 = vmatpush1.msra.mxu0 0.0
  %1286 = vmatprep.subr.mxu0 0.0
  %1287 = vmatpush1.msra.mxu0 0.0
  %1288 = vmatprep.subr.mxu0 0.0
  %1289 = vmatpush1.msra.mxu0 0.0
  %1290 = vmatprep.subr.mxu0 0.0
  %1291 = vmatpush1.msra.mxu0 0.0
  %1292 = vmatprep.subr.mxu0 0.0
  %1293 = vmatpush1.msra.mxu0 0.0
  %1294 = vmatprep.subr.mxu0 0.0
  %1295 = vmatpush1.msra.mxu0 0.0
  %1296 = vmatprep.subr.mxu0 0.0
  %1297 = vmatpush1.msra.mxu0 0.0
  %1298 = vmatprep.subr.mxu0 0.0
  %1299 = vmatpush1.msra.mxu0 0.0
  %1300 = vmatprep.subr.mxu0 0.0
  %1301 = vmatpush1.msra.mxu0 0.0
  %1302 = vmatprep.subr.mxu0 0.0
  %1303 = vmatpush1.msra.mxu0 0.0
  %1304 = vmatprep.subr.mxu0 0.0
  %1305 = vmatpush1.msra.mxu0 0.0
  %1306 = vmatprep.subr.mxu0 0.0
  %1307 = vmatpush1.msra.mxu0 0.0
  %1308 = vmatprep.subr.mxu0 0.0
  %1309 = vmatpush1.msra.mxu0 0.0
  %1310 = vmatprep.subr.mxu0 0.0
  %1311 = vmatpush1.msra.mxu0 0.0
  %1312 = vmatprep.mubr.f32.mxu0 0.0
  %1313 = vmatmul.mubr.f32.gmra.mrb[0].mxu0 %v1246
  %v1314 = vpop.f32.mrb[0].mxu0
  %v1315 = vadd.f32 %v1243, %v1314
  %v1316 = vpop.f32.mrb[0].mxu0
  %1317 = vdwg.mxu0
  %vm1318 = vcmask 130048
  %1319 = vst.msk [vmem:[%s12] sm:$0xff] %vm1318, %v1315
  %1321 = vst.msk [vmem:[%s13] sm:$0xff] %vm209, %v1160
  %1323 = vrot.lane.b32.xlu0 %v1140, 96
  %v1324 = vpop.permute.xlu0 %1323
  %1326 = vst.msk [vmem:[%s14] sm:$0xff] %vm209, %v1324
  // Predicated region
  $region50: #{recurrent_latent_encoder_fwd.1} parent=0 // pred_check
    _
  $region51: #{recurrent_latent_encoder_fwd.1} parent=0 // pred_check_branch
    %1328 = sbr.rel (0) target = $region53
  $region52: #{recurrent_latent_encoder_fwd.1} parent=0 // pred_region
    _
  $region53: #{recurrent_latent_encoder_fwd.1} parent=0 // pred_fallthru
    _
  // Predicated region
  $region54: #{recurrent_latent_encoder_fwd.1} parent=0 // pred_check
    _
  $region55: #{recurrent_latent_encoder_fwd.1} parent=0 // pred_check_branch
    %1330 = sbr.rel (0) target = $region57
  $region56: #{recurrent_latent_encoder_fwd.1} parent=0 // pred_region
    _
  $region57: #{recurrent_latent_encoder_fwd.1} parent=0 // pred_fallthru
    _
  // Predicated region
  $region58: #{recurrent_latent_encoder_fwd.1} parent=0 // pred_check
    _
  $region59: #{recurrent_latent_encoder_fwd.1} parent=0 // pred_check_branch
    %1332 = sbr.rel (0) target = $region61
  $region60: #{recurrent_latent_encoder_fwd.1} parent=0 // pred_region
    _
  $region61: #{recurrent_latent_encoder_fwd.1} parent=0 // pred_fallthru
    _
  // Predicated region
  $region62: #{recurrent_latent_encoder_fwd.1} parent=0 // pred_check
    _
  $region63: #{recurrent_latent_encoder_fwd.1} parent=0 // pred_check_branch
    %1334 = sbr.rel (0) target = $region65
  $region64: #{recurrent_latent_encoder_fwd.1} parent=0 // pred_region
    _
  $region65: #{recurrent_latent_encoder_fwd.1} parent=0 // pred_fallthru
    _
  // Predicated region
  $region66: #{recurrent_latent_encoder_fwd.1} parent=0 // pred_check
    _
  $region67: #{recurrent_latent_encoder_fwd.1} parent=0 // pred_check_branch
    %1336 = sbr.rel (0) target = $region69
  $region68: #{recurrent_latent_encoder_fwd.1} parent=0 // pred_region
    _
  $region69: #{recurrent_latent_encoder_fwd.1} parent=0 // pred_fallthru
    _
  // Predicated region
  $region70: #{recurrent_latent_encoder_fwd.1} parent=0 // pred_check
    _
  $region71: #{recurrent_latent_encoder_fwd.1} parent=0 // pred_check_branch
    %1338 = sbr.rel (0) target = $region73
  $region72: #{recurrent_latent_encoder_fwd.1} parent=0 // pred_region
    _
  $region73: #{recurrent_latent_encoder_fwd.1} parent=0 // pred_fallthru
    _

</llo_original>
